<compile_context>
chip_gen: v5e
topology: v5e:2x2
jax: 0.10.0
libtpu: 0.0.40
codegen_flags: <defaults>
</compile_context>

<pallas_src>
import functools

import jax
import jax.numpy as jnp
from jax import lax
from jax.experimental import pallas as pl
from jax.experimental.pallas import tpu as pltpu


# -----------------------------------------------------------------------------
# Fused kernel
# -----------------------------------------------------------------------------
def _sage(x, adj_bf, inv_deg, wcat, bl):
    """SAGEConv (mean aggr): inv_deg*(A @ (x@Wl)) + x@Wr + bl, ReLU fused.

    wcat = [Wl | Wr] (fin, 2*fout) bf16, so one matmul produces both terms.
    """
    fout = wcat.shape[1] // 2
    y = jnp.dot(x.astype(jnp.bfloat16), wcat,
                preferred_element_type=jnp.float32)          # (N, 2*fout) f32
    y_l = y[:, :fout]
    y_r = y[:, fout:]
    agg = jnp.dot(adj_bf, y_l.astype(jnp.bfloat16),
                  preferred_element_type=jnp.float32) * inv_deg
    return jnp.maximum(agg + y_r + bl, 0.0)


def _gat_mean_heads(x, neg, has, wg, msrc, mdst, bg, *, heads):
    """GATConv (add_self_loops=False) -> ReLU -> mean over heads.

    neg : (N,N) f32 additive mask, 0 on edges, -1e30 elsewhere (built once).
    has : (N,1) bool, True iff the dst node has at least one incoming edge.
    msrc: (H, H*C) block matrix, row h holds att_src[h] in cols h*C:(h+1)*C.
    mdst: (H*C, H) block matrix, col h holds att_dst[h] in rows h*C:(h+1)*C.
    """
    n = x.shape[0]
    c = wg.shape[1] // heads
    # Lane-dense projection: (N, H*C = 128) stays packed in the lane dim.
    xp = jnp.dot(x.astype(jnp.bfloat16), wg,
                 preferred_element_type=jnp.float32)          # (N, H*C) f32
    # Per-head attention pre-terms, produced directly in the orientation needed
    # (no in-kernel (N,1)->(1,N) relayouts).
    a_dst = jnp.dot(xp, mdst, preferred_element_type=jnp.float32)        # (N, H)
    a_src = lax.dot_general(msrc, xp, (((1,), (1,)), ((), ())),
                            preferred_element_type=jnp.float32)          # (H, N)

    acc = jnp.zeros((n, c), jnp.float32)
    for h in range(heads):                                    # static unroll
        e = a_dst[:, h:h + 1] + a_src[h:h + 1, :]             # (N_dst, N_src)
        e = jnp.maximum(e, 0.2 * e)                           # LeakyReLU(0.2)
        e = e + neg                                           # mask non-edges
        m = jnp.max(e, axis=-1, keepdims=True)
        p = jnp.exp(e - m)                                    # masked -> 0
        denom = jnp.sum(p, axis=-1, keepdims=True)
        alpha = p * pl.reciprocal(denom, approx=True)         # EUP slot
        xph = xp[:, h * c:(h + 1) * c]                        # (N, C)
        agg_h = jnp.dot(alpha.astype(jnp.bfloat16), xph.astype(jnp.bfloat16),
                        preferred_element_type=jnp.float32)
        agg_h = jnp.where(has, agg_h, 0.0)                    # isolated dst -> 0
        acc = acc + jnp.maximum(agg_h + bg[:, h * c:(h + 1) * c], 0.0)
    return acc * (1.0 / heads)           # x.relu().view(-1,H,C).mean(1)


def _gnn_fused_kernel(*refs, heads, num_layers):
    x_ref, adj_ref, invdeg_ref = refs[0], refs[1], refs[2]
    layer_refs = refs[3:3 + 6 * num_layers]
    wpen_ref = refs[3 + 6 * num_layers]
    bpen_ref = refs[4 + 6 * num_layers]          # (1,1) in SMEM
    o_ref = refs[5 + 6 * num_layers]

    x = x_ref[...]                               # (N, F) f32
    adj_bf = adj_ref[...]                        # (N, N) bf16 0/1
    inv_deg = invdeg_ref[...]                    # (N, 1) f32 (0 for isolated)
    has = inv_deg > 0.0                          # (N, 1) bool
    # Additive softmax mask, built once for all layers/heads.
    neg = (adj_bf.astype(jnp.float32) - 1.0) * jnp.float32(1e30)

    for layer in range(num_layers):
        wcat, bl, wg, msrc, mdst, bg = (
            r[...] for r in layer_refs[6 * layer:6 * (layer + 1)])
        x = _sage(x, adj_bf, inv_deg, wcat, bl)
        x = _gat_mean_heads(x, neg, has, wg, msrc, mdst, bg, heads=heads)

    # penalty = Linear(out,1) on the VPU (broadcast mul + row reduce), then
    # x *= exp(penalty) and row-wise L2 normalize (F.normalize, eps=1e-12).
    p = jnp.sum(x * wpen_ref[...], axis=-1, keepdims=True) + bpen_ref[0, 0]
    x = x * jnp.exp(p)
    sumsq = jnp.sum(x * x, axis=-1, keepdims=True)
    inv_nrm = lax.rsqrt(jnp.maximum(sumsq, 1e-24))     # == 1/max(||x||,1e-12)
    o_ref[...] = x * inv_nrm


# -----------------------------------------------------------------------------
# Wrapper (host-side parameter packing + single pallas_call)
# -----------------------------------------------------------------------------
def _full_spec(shape):
    zeros = (0,) * len(shape)
    return pl.BlockSpec(shape, lambda i, _z=zeros: _z)


def _att_block_rows(att):
    """(H, C) -> (H, H*C): row h holds att[h] in columns h*C:(h+1)*C."""
    h_, c_ = att.shape
    out = jnp.zeros((h_, h_ * c_), jnp.float32)
    for h in range(h_):
        out = out.at[h, h * c_:(h + 1) * c_].set(att[h])
    return out


@functools.partial(jax.jit, static_argnames=("heads",))
def gnn_forward(params, x, edge_index, *, heads=4):
    n = x.shape[0]
    src, dst = edge_index[0], edge_index[1]
    # adj[i, j] = 1 iff there is a message edge j -> i.
    # TODO(synk): duplicate edges collapse here; a multigraph needs .add counts.
    adj = jnp.zeros((n, n), jnp.float32).at[dst, src].set(1.0)
    deg = adj.sum(axis=1, keepdims=True)
    inv_deg = jnp.where(deg > 0.0, 1.0 / jnp.maximum(deg, 1.0), 0.0)

    inputs = [x.astype(jnp.float32),
              adj.astype(jnp.bfloat16),           # exact for 0/1
              inv_deg.astype(jnp.float32)]
    for lp in params["layers"]:
        wcat = jnp.concatenate([lp["wl"], lp["wr"]], axis=1)    # (fin, 2*fout)
        inputs += [
            wcat.astype(jnp.bfloat16),
            lp["bl"].reshape(1, -1).astype(jnp.float32),
            lp["wg"].astype(jnp.bfloat16),
            _att_block_rows(lp["att_src"]),                     # (H, H*C) f32
            _att_block_rows(lp["att_dst"]).T,                   # (H*C, H) f32
            lp["bg"].reshape(1, -1).astype(jnp.float32),
        ]
    inputs += [params["penalty"]["w"].reshape(1, -1).astype(jnp.float32),
               params["penalty"]["b"].reshape(1, 1).astype(jnp.float32)]

    out_dim = params["layers"][-1]["wg"].shape[1] // heads
    kernel = functools.partial(_gnn_fused_kernel, heads=heads,
                               num_layers=len(params["layers"]))

    in_specs = [_full_spec(a.shape) for a in inputs[:-1]]
    # (1,1) penalty bias: scalar in SMEM (no padded (8,128) VMEM tile).
    in_specs.append(pl.BlockSpec(memory_space=pltpu.MemorySpace.SMEM))

    return pl.pallas_call(
        kernel,
        out_shape=jax.ShapeDtypeStruct((n, out_dim), jnp.float32),
        grid=(1,),
        in_specs=in_specs,
        out_specs=_full_spec((n, out_dim)),
        compiler_params=pltpu.CompilerParams(
            dimension_semantics=("arbitrary",),
            vmem_limit_bytes=64 * 1024 * 1024),   # safe on v5e/v6e, == v7x phys
    )(*inputs)


# -----------------------------------------------------------------------------
# Deterministic parameter init
# -----------------------------------------------------------------------------
class _KeyGen:
    def __init__(self, key):
        self._key = key

    def __call__(self):
        self._key, sub = jax.random.split(self._key)
        return sub


def _rnd(kg, shape, scale=0.1):
    return scale * jax.random.normal(kg(), shape, dtype=jnp.float32)


def init_params(key, in_dim=32, hidden=32, out=32, heads=4):
    kg = _KeyGen(key)

    def sage_p(fin, fout):
        return {"wl": _rnd(kg, (fin, fout)), "bl": _rnd(kg, (fout,)),
                "wr": _rnd(kg, (fin, fout))}

    def gat_p(fin, fout):
        return {"wg": _rnd(kg, (fin, heads * fout)),
                "att_src": _rnd(kg, (heads, fout)),
                "att_dst": _rnd(kg, (heads, fout)),
                "bg": _rnd(kg, (heads * fout,))}

    def layer_p(fin, f_sage, f_gat):
        d = sage_p(fin, f_sage)
        d.update(gat_p(f_sage, f_gat))
        return d

    layers = [layer_p(in_dim, hidden, hidden),     # conv1 + attn1
              layer_p(hidden, hidden, hidden),     # conv2 + attn2
              layer_p(hidden, out, out)]           # conv3 + attn3
    return {"layers": layers,
            "penalty": {"w": _rnd(kg, (out,)), "b": _rnd(kg, (1,))}}


# -----------------------------------------------------------------------------
if __name__ == "__main__":
    key = jax.random.PRNGKey(0)
    n_nodes, in_dim, hidden, out, heads = 16, 32, 32, 32, 4
    n_edges = 48

    k_p, k_x, k_e = jax.random.split(key, 3)
    params = init_params(k_p, in_dim=in_dim, hidden=hidden, out=out, heads=heads)
    x = jax.random.normal(k_x, (n_nodes, in_dim), dtype=jnp.float32)

    # unique directed message edges (src, dst)
    eid = jax.random.choice(k_e, n_nodes * n_nodes, shape=(n_edges,), replace=False)
    edge_index = jnp.stack([eid // n_nodes, eid % n_nodes]).astype(jnp.int32)

    emb = gnn_forward(params, x, edge_index, heads=heads)
    jax.block_until_ready(emb)
    assert emb.shape == (n_nodes, out)
    assert bool(jnp.all(jnp.isfinite(emb)))
    print("KERNEL_OK")
</pallas_src>

<mosaic_0001>
module attributes {stable_mosaic.version = 11 : i64} {
  func.func @_gnn_fused_kernel(%arg0: i32, %arg1: memref<16x32xf32, #tpu.memory_space<vmem>>, %arg2: memref<16x16xbf16, #tpu.memory_space<vmem>>, %arg3: memref<16x1xf32, #tpu.memory_space<vmem>>, %arg4: memref<32x64xbf16, #tpu.memory_space<vmem>>, %arg5: memref<1x32xf32, #tpu.memory_space<vmem>>, %arg6: memref<32x128xbf16, #tpu.memory_space<vmem>>, %arg7: memref<4x128xf32, #tpu.memory_space<vmem>>, %arg8: memref<128x4xf32, #tpu.memory_space<vmem>>, %arg9: memref<1x128xf32, #tpu.memory_space<vmem>>, %arg10: memref<32x64xbf16, #tpu.memory_space<vmem>>, %arg11: memref<1x32xf32, #tpu.memory_space<vmem>>, %arg12: memref<32x128xbf16, #tpu.memory_space<vmem>>, %arg13: memref<4x128xf32, #tpu.memory_space<vmem>>, %arg14: memref<128x4xf32, #tpu.memory_space<vmem>>, %arg15: memref<1x128xf32, #tpu.memory_space<vmem>>, %arg16: memref<32x64xbf16, #tpu.memory_space<vmem>>, %arg17: memref<1x32xf32, #tpu.memory_space<vmem>>, %arg18: memref<32x128xbf16, #tpu.memory_space<vmem>>, %arg19: memref<4x128xf32, #tpu.memory_space<vmem>>, %arg20: memref<128x4xf32, #tpu.memory_space<vmem>>, %arg21: memref<1x128xf32, #tpu.memory_space<vmem>>, %arg22: memref<1x32xf32, #tpu.memory_space<vmem>>, %arg23: memref<1x1xf32, #tpu.memory_space<smem>>, %arg24: memref<16x32xf32, #tpu.memory_space<vmem>>) attributes {dimension_semantics = [#tpu.dimension_semantics<arbitrary>], iteration_bounds = array<i64: 1>, scalar_prefetch = 0 : i64, scratch_operands = 0 : i64, tpu.core_type = #tpu.core_type<tc>, window_params = [{pipeline_mode = #tpu.pipeline_mode<synchronous>, transform_indices = @transform_0, window_bounds = array<i64: 16, 32>}, {pipeline_mode = #tpu.pipeline_mode<synchronous>, transform_indices = @transform_1, window_bounds = array<i64: 16, 16>}, {pipeline_mode = #tpu.pipeline_mode<synchronous>, transform_indices = @transform_2, window_bounds = array<i64: 16, 1>}, {pipeline_mode = #tpu.pipeline_mode<synchronous>, transform_indices = @transform_3, window_bounds = array<i64: 32, 64>}, {pipeline_mode = #tpu.pipeline_mode<synchronous>, transform_indices = @transform_4, window_bounds = array<i64: 1, 32>}, {pipeline_mode = #tpu.pipeline_mode<synchronous>, transform_indices = @transform_5, window_bounds = array<i64: 32, 128>}, {pipeline_mode = #tpu.pipeline_mode<synchronous>, transform_indices = @transform_6, window_bounds = array<i64: 4, 128>}, {pipeline_mode = #tpu.pipeline_mode<synchronous>, transform_indices = @transform_7, window_bounds = array<i64: 128, 4>}, {pipeline_mode = #tpu.pipeline_mode<synchronous>, transform_indices = @transform_8, window_bounds = array<i64: 1, 128>}, {pipeline_mode = #tpu.pipeline_mode<synchronous>, transform_indices = @transform_9, window_bounds = array<i64: 32, 64>}, {pipeline_mode = #tpu.pipeline_mode<synchronous>, transform_indices = @transform_10, window_bounds = array<i64: 1, 32>}, {pipeline_mode = #tpu.pipeline_mode<synchronous>, transform_indices = @transform_11, window_bounds = array<i64: 32, 128>}, {pipeline_mode = #tpu.pipeline_mode<synchronous>, transform_indices = @transform_12, window_bounds = array<i64: 4, 128>}, {pipeline_mode = #tpu.pipeline_mode<synchronous>, transform_indices = @transform_13, window_bounds = array<i64: 128, 4>}, {pipeline_mode = #tpu.pipeline_mode<synchronous>, transform_indices = @transform_14, window_bounds = array<i64: 1, 128>}, {pipeline_mode = #tpu.pipeline_mode<synchronous>, transform_indices = @transform_15, window_bounds = array<i64: 32, 64>}, {pipeline_mode = #tpu.pipeline_mode<synchronous>, transform_indices = @transform_16, window_bounds = array<i64: 1, 32>}, {pipeline_mode = #tpu.pipeline_mode<synchronous>, transform_indices = @transform_17, window_bounds = array<i64: 32, 128>}, {pipeline_mode = #tpu.pipeline_mode<synchronous>, transform_indices = @transform_18, window_bounds = array<i64: 4, 128>}, {pipeline_mode = #tpu.pipeline_mode<synchronous>, transform_indices = @transform_19, window_bounds = array<i64: 128, 4>}, {pipeline_mode = #tpu.pipeline_mode<synchronous>, transform_indices = @transform_20, window_bounds = array<i64: 1, 128>}, {pipeline_mode = #tpu.pipeline_mode<synchronous>, transform_indices = @transform_21, window_bounds = array<i64: 1, 32>}, {transform_indices = @transform_22, window_bounds = array<i64: 1, 1>}, {pipeline_mode = #tpu.pipeline_mode<synchronous>, transform_indices = @transform_23, window_bounds = array<i64: 16, 32>}]} {
    %c0 = arith.constant 0 : index
    %c0_0 = arith.constant 0 : index
    %0 = vector.load %arg1[%c0, %c0_0] : memref<16x32xf32, #tpu.memory_space<vmem>>, vector<16x32xf32>
    %c0_1 = arith.constant 0 : index
    %c0_2 = arith.constant 0 : index
    %1 = vector.load %arg2[%c0_1, %c0_2] : memref<16x16xbf16, #tpu.memory_space<vmem>>, vector<16x16xbf16>
    %c0_3 = arith.constant 0 : index
    %c0_4 = arith.constant 0 : index
    %2 = vector.load %arg3[%c0_3, %c0_4] : memref<16x1xf32, #tpu.memory_space<vmem>>, vector<16x1xf32>
    %cst = arith.constant 0.000000e+00 : f32
    %3 = vector.broadcast %cst : f32 to vector<16x1xf32>
    %4 = arith.cmpf ogt, %2, %3 : vector<16x1xf32>
    %5 = arith.extf %1 : vector<16x16xbf16> to vector<16x16xf32>
    %cst_5 = arith.constant 1.000000e+00 : f32
    %6 = vector.broadcast %cst_5 : f32 to vector<16x16xf32>
    %7 = arith.subf %5, %6 : vector<16x16xf32>
    %cst_6 = arith.constant 1.000000e+30 : f32
    %8 = vector.broadcast %cst_6 : f32 to vector<16x16xf32>
    %9 = arith.mulf %7, %8 : vector<16x16xf32>
    %c0_7 = arith.constant 0 : index
    %c0_8 = arith.constant 0 : index
    %10 = vector.load %arg4[%c0_7, %c0_8] : memref<32x64xbf16, #tpu.memory_space<vmem>>, vector<32x64xbf16>
    %c0_9 = arith.constant 0 : index
    %c0_10 = arith.constant 0 : index
    %11 = vector.load %arg5[%c0_9, %c0_10] : memref<1x32xf32, #tpu.memory_space<vmem>>, vector<1x32xf32>
    %c0_11 = arith.constant 0 : index
    %c0_12 = arith.constant 0 : index
    %12 = vector.load %arg6[%c0_11, %c0_12] : memref<32x128xbf16, #tpu.memory_space<vmem>>, vector<32x128xbf16>
    %c0_13 = arith.constant 0 : index
    %c0_14 = arith.constant 0 : index
    %13 = vector.load %arg7[%c0_13, %c0_14] : memref<4x128xf32, #tpu.memory_space<vmem>>, vector<4x128xf32>
    %c0_15 = arith.constant 0 : index
    %c0_16 = arith.constant 0 : index
    %14 = vector.load %arg8[%c0_15, %c0_16] : memref<128x4xf32, #tpu.memory_space<vmem>>, vector<128x4xf32>
    %c0_17 = arith.constant 0 : index
    %c0_18 = arith.constant 0 : index
    %15 = vector.load %arg9[%c0_17, %c0_18] : memref<1x128xf32, #tpu.memory_space<vmem>>, vector<1x128xf32>
    %16 = arith.truncf %0 : vector<16x32xf32> to vector<16x32xbf16>
    %cst_19 = arith.constant dense<0.000000e+00> : vector<16x64xf32>
    %17 = tpu.matmul %16, %10, %cst_19 {dimension_numbers = #tpu.dot_dimension_numbers<[1], [0], [0], [1], [0, 0, 1, 1], [], []>} : vector<16x32xbf16>, vector<32x64xbf16>, vector<16x64xf32> -> vector<16x64xf32>
    %18 = vector.extract_strided_slice %17 {offsets = [0, 0], sizes = [16, 32], strides = [1, 1]} : vector<16x64xf32> to vector<16x32xf32>
    %19 = vector.extract_strided_slice %17 {offsets = [0, 32], sizes = [16, 32], strides = [1, 1]} : vector<16x64xf32> to vector<16x32xf32>
    %20 = arith.truncf %18 : vector<16x32xf32> to vector<16x32xbf16>
    %cst_20 = arith.constant dense<0.000000e+00> : vector<16x32xf32>
    %21 = tpu.matmul %1, %20, %cst_20 {dimension_numbers = #tpu.dot_dimension_numbers<[1], [0], [0], [1], [0, 0, 1, 1], [], []>} : vector<16x16xbf16>, vector<16x32xbf16>, vector<16x32xf32> -> vector<16x32xf32>
    %22 = vector.broadcast %2 : vector<16x1xf32> to vector<16x32xf32>
    %23 = arith.mulf %21, %22 : vector<16x32xf32>
    %24 = arith.addf %23, %19 : vector<16x32xf32>
    %25 = vector.broadcast %11 : vector<1x32xf32> to vector<16x32xf32>
    %26 = arith.addf %24, %25 : vector<16x32xf32>
    %cst_21 = arith.constant 0.000000e+00 : f32
    %27 = vector.broadcast %cst_21 : f32 to vector<16x32xf32>
    %28 = arith.maximumf %26, %27 : vector<16x32xf32>
    %29 = arith.truncf %28 : vector<16x32xf32> to vector<16x32xbf16>
    %cst_22 = arith.constant dense<0.000000e+00> : vector<16x128xf32>
    %30 = tpu.matmul %29, %12, %cst_22 {dimension_numbers = #tpu.dot_dimension_numbers<[1], [0], [0], [1], [0, 0, 1, 1], [], []>} : vector<16x32xbf16>, vector<32x128xbf16>, vector<16x128xf32> -> vector<16x128xf32>
    %cst_23 = arith.constant dense<0.000000e+00> : vector<16x4xf32>
    %31 = tpu.matmul %30, %14, %cst_23 {dimension_numbers = #tpu.dot_dimension_numbers<[1], [0], [0], [1], [0, 0, 1, 1], [], []>} : vector<16x128xf32>, vector<128x4xf32>, vector<16x4xf32> -> vector<16x4xf32>
    %cst_24 = arith.constant dense<0.000000e+00> : vector<4x16xf32>
    %32 = tpu.matmul %13, %30, %cst_24 {dimension_numbers = #tpu.dot_dimension_numbers<[1], [1], [0], [0], [0, 0, 1, 0], [], []>} : vector<4x128xf32>, vector<16x128xf32>, vector<4x16xf32> -> vector<4x16xf32>
    %cst_25 = arith.constant 0.000000e+00 : f32
    %33 = vector.broadcast %cst_25 : f32 to vector<16x32xf32>
    %34 = vector.extract_strided_slice %31 {offsets = [0, 0], sizes = [16, 1], strides = [1, 1]} : vector<16x4xf32> to vector<16x1xf32>
    %35 = vector.extract_strided_slice %32 {offsets = [0, 0], sizes = [1, 16], strides = [1, 1]} : vector<4x16xf32> to vector<1x16xf32>
    %36 = vector.broadcast %34 : vector<16x1xf32> to vector<16x16xf32>
    %37 = vector.broadcast %35 : vector<1x16xf32> to vector<16x16xf32>
    %38 = arith.addf %36, %37 : vector<16x16xf32>
    %cst_26 = arith.constant 2.000000e-01 : f32
    %39 = vector.broadcast %cst_26 : f32 to vector<16x16xf32>
    %40 = arith.mulf %39, %38 : vector<16x16xf32>
    %41 = arith.maximumf %38, %40 : vector<16x16xf32>
    %42 = arith.addf %41, %9 : vector<16x16xf32>
    %cst_27 = arith.constant dense<0xFF800000> : vector<16xf32>
    %43 = vector.multi_reduction <maximumf>, %42, %cst_27 [1] : vector<16x16xf32> to vector<16xf32>
    %44 = vector.shape_cast %43 : vector<16xf32> to vector<16x1xf32>
    %45 = vector.broadcast %44 : vector<16x1xf32> to vector<16x16xf32>
    %46 = arith.subf %42, %45 : vector<16x16xf32>
    %47 = math.exp %46 : vector<16x16xf32>
    %cst_28 = arith.constant dense<0.000000e+00> : vector<16xf32>
    %48 = vector.multi_reduction <add>, %47, %cst_28 [1] : vector<16x16xf32> to vector<16xf32>
    %49 = vector.shape_cast %48 : vector<16xf32> to vector<16x1xf32>
    %50 = tpu.reciprocal %49 {approx = true} : vector<16x1xf32> -> vector<16x1xf32>
    %51 = vector.broadcast %50 : vector<16x1xf32> to vector<16x16xf32>
    %52 = arith.mulf %47, %51 : vector<16x16xf32>
    %53 = vector.extract_strided_slice %30 {offsets = [0, 0], sizes = [16, 32], strides = [1, 1]} : vector<16x128xf32> to vector<16x32xf32>
    %54 = arith.truncf %52 : vector<16x16xf32> to vector<16x16xbf16>
    %55 = arith.truncf %53 : vector<16x32xf32> to vector<16x32xbf16>
    %cst_29 = arith.constant dense<0.000000e+00> : vector<16x32xf32>
    %56 = tpu.matmul %54, %55, %cst_29 {dimension_numbers = #tpu.dot_dimension_numbers<[1], [0], [0], [1], [0, 0, 1, 1], [], []>} : vector<16x16xbf16>, vector<16x32xbf16>, vector<16x32xf32> -> vector<16x32xf32>
    %cst_30 = arith.constant 0.000000e+00 : f32
    %57 = vector.shape_cast %4 : vector<16x1xi1> to vector<16x1xi1>
    %58 = vector.broadcast %57 : vector<16x1xi1> to vector<16x32xi1>
    %59 = vector.broadcast %cst_30 : f32 to vector<16x32xf32>
    %60 = arith.select %58, %56, %59 : vector<16x32xi1>, vector<16x32xf32>
    %61 = vector.extract_strided_slice %15 {offsets = [0, 0], sizes = [1, 32], strides = [1, 1]} : vector<1x128xf32> to vector<1x32xf32>
    %62 = vector.broadcast %61 : vector<1x32xf32> to vector<16x32xf32>
    %63 = arith.addf %60, %62 : vector<16x32xf32>
    %cst_31 = arith.constant 0.000000e+00 : f32
    %64 = vector.broadcast %cst_31 : f32 to vector<16x32xf32>
    %65 = arith.maximumf %63, %64 : vector<16x32xf32>
    %66 = arith.addf %33, %65 : vector<16x32xf32>
    %67 = vector.extract_strided_slice %31 {offsets = [0, 1], sizes = [16, 1], strides = [1, 1]} : vector<16x4xf32> to vector<16x1xf32>
    %68 = vector.extract_strided_slice %32 {offsets = [1, 0], sizes = [1, 16], strides = [1, 1]} : vector<4x16xf32> to vector<1x16xf32>
    %69 = vector.broadcast %67 : vector<16x1xf32> to vector<16x16xf32>
    %70 = vector.broadcast %68 : vector<1x16xf32> to vector<16x16xf32>
    %71 = arith.addf %69, %70 : vector<16x16xf32>
    %cst_32 = arith.constant 2.000000e-01 : f32
    %72 = vector.broadcast %cst_32 : f32 to vector<16x16xf32>
    %73 = arith.mulf %72, %71 : vector<16x16xf32>
    %74 = arith.maximumf %71, %73 : vector<16x16xf32>
    %75 = arith.addf %74, %9 : vector<16x16xf32>
    %cst_33 = arith.constant dense<0xFF800000> : vector<16xf32>
    %76 = vector.multi_reduction <maximumf>, %75, %cst_33 [1] : vector<16x16xf32> to vector<16xf32>
    %77 = vector.shape_cast %76 : vector<16xf32> to vector<16x1xf32>
    %78 = vector.broadcast %77 : vector<16x1xf32> to vector<16x16xf32>
    %79 = arith.subf %75, %78 : vector<16x16xf32>
    %80 = math.exp %79 : vector<16x16xf32>
    %cst_34 = arith.constant dense<0.000000e+00> : vector<16xf32>
    %81 = vector.multi_reduction <add>, %80, %cst_34 [1] : vector<16x16xf32> to vector<16xf32>
    %82 = vector.shape_cast %81 : vector<16xf32> to vector<16x1xf32>
    %83 = tpu.reciprocal %82 {approx = true} : vector<16x1xf32> -> vector<16x1xf32>
    %84 = vector.broadcast %83 : vector<16x1xf32> to vector<16x16xf32>
    %85 = arith.mulf %80, %84 : vector<16x16xf32>
    %86 = vector.extract_strided_slice %30 {offsets = [0, 32], sizes = [16, 32], strides = [1, 1]} : vector<16x128xf32> to vector<16x32xf32>
    %87 = arith.truncf %85 : vector<16x16xf32> to vector<16x16xbf16>
    %88 = arith.truncf %86 : vector<16x32xf32> to vector<16x32xbf16>
    %cst_35 = arith.constant dense<0.000000e+00> : vector<16x32xf32>
    %89 = tpu.matmul %87, %88, %cst_35 {dimension_numbers = #tpu.dot_dimension_numbers<[1], [0], [0], [1], [0, 0, 1, 1], [], []>} : vector<16x16xbf16>, vector<16x32xbf16>, vector<16x32xf32> -> vector<16x32xf32>
    %cst_36 = arith.constant 0.000000e+00 : f32
    %90 = vector.shape_cast %4 : vector<16x1xi1> to vector<16x1xi1>
    %91 = vector.broadcast %90 : vector<16x1xi1> to vector<16x32xi1>
    %92 = vector.broadcast %cst_36 : f32 to vector<16x32xf32>
    %93 = arith.select %91, %89, %92 : vector<16x32xi1>, vector<16x32xf32>
    %94 = vector.extract_strided_slice %15 {offsets = [0, 32], sizes = [1, 32], strides = [1, 1]} : vector<1x128xf32> to vector<1x32xf32>
    %95 = vector.broadcast %94 : vector<1x32xf32> to vector<16x32xf32>
    %96 = arith.addf %93, %95 : vector<16x32xf32>
    %cst_37 = arith.constant 0.000000e+00 : f32
    %97 = vector.broadcast %cst_37 : f32 to vector<16x32xf32>
    %98 = arith.maximumf %96, %97 : vector<16x32xf32>
    %99 = arith.addf %66, %98 : vector<16x32xf32>
    %100 = vector.extract_strided_slice %31 {offsets = [0, 2], sizes = [16, 1], strides = [1, 1]} : vector<16x4xf32> to vector<16x1xf32>
    %101 = vector.extract_strided_slice %32 {offsets = [2, 0], sizes = [1, 16], strides = [1, 1]} : vector<4x16xf32> to vector<1x16xf32>
    %102 = vector.broadcast %100 : vector<16x1xf32> to vector<16x16xf32>
    %103 = vector.broadcast %101 : vector<1x16xf32> to vector<16x16xf32>
    %104 = arith.addf %102, %103 : vector<16x16xf32>
    %cst_38 = arith.constant 2.000000e-01 : f32
    %105 = vector.broadcast %cst_38 : f32 to vector<16x16xf32>
    %106 = arith.mulf %105, %104 : vector<16x16xf32>
    %107 = arith.maximumf %104, %106 : vector<16x16xf32>
    %108 = arith.addf %107, %9 : vector<16x16xf32>
    %cst_39 = arith.constant dense<0xFF800000> : vector<16xf32>
    %109 = vector.multi_reduction <maximumf>, %108, %cst_39 [1] : vector<16x16xf32> to vector<16xf32>
    %110 = vector.shape_cast %109 : vector<16xf32> to vector<16x1xf32>
    %111 = vector.broadcast %110 : vector<16x1xf32> to vector<16x16xf32>
    %112 = arith.subf %108, %111 : vector<16x16xf32>
    %113 = math.exp %112 : vector<16x16xf32>
    %cst_40 = arith.constant dense<0.000000e+00> : vector<16xf32>
    %114 = vector.multi_reduction <add>, %113, %cst_40 [1] : vector<16x16xf32> to vector<16xf32>
    %115 = vector.shape_cast %114 : vector<16xf32> to vector<16x1xf32>
    %116 = tpu.reciprocal %115 {approx = true} : vector<16x1xf32> -> vector<16x1xf32>
    %117 = vector.broadcast %116 : vector<16x1xf32> to vector<16x16xf32>
    %118 = arith.mulf %113, %117 : vector<16x16xf32>
    %119 = vector.extract_strided_slice %30 {offsets = [0, 64], sizes = [16, 32], strides = [1, 1]} : vector<16x128xf32> to vector<16x32xf32>
    %120 = arith.truncf %118 : vector<16x16xf32> to vector<16x16xbf16>
    %121 = arith.truncf %119 : vector<16x32xf32> to vector<16x32xbf16>
    %cst_41 = arith.constant dense<0.000000e+00> : vector<16x32xf32>
    %122 = tpu.matmul %120, %121, %cst_41 {dimension_numbers = #tpu.dot_dimension_numbers<[1], [0], [0], [1], [0, 0, 1, 1], [], []>} : vector<16x16xbf16>, vector<16x32xbf16>, vector<16x32xf32> -> vector<16x32xf32>
    %cst_42 = arith.constant 0.000000e+00 : f32
    %123 = vector.shape_cast %4 : vector<16x1xi1> to vector<16x1xi1>
    %124 = vector.broadcast %123 : vector<16x1xi1> to vector<16x32xi1>
    %125 = vector.broadcast %cst_42 : f32 to vector<16x32xf32>
    %126 = arith.select %124, %122, %125 : vector<16x32xi1>, vector<16x32xf32>
    %127 = vector.extract_strided_slice %15 {offsets = [0, 64], sizes = [1, 32], strides = [1, 1]} : vector<1x128xf32> to vector<1x32xf32>
    %128 = vector.broadcast %127 : vector<1x32xf32> to vector<16x32xf32>
    %129 = arith.addf %126, %128 : vector<16x32xf32>
    %cst_43 = arith.constant 0.000000e+00 : f32
    %130 = vector.broadcast %cst_43 : f32 to vector<16x32xf32>
    %131 = arith.maximumf %129, %130 : vector<16x32xf32>
    %132 = arith.addf %99, %131 : vector<16x32xf32>
    %133 = vector.extract_strided_slice %31 {offsets = [0, 3], sizes = [16, 1], strides = [1, 1]} : vector<16x4xf32> to vector<16x1xf32>
    %134 = vector.extract_strided_slice %32 {offsets = [3, 0], sizes = [1, 16], strides = [1, 1]} : vector<4x16xf32> to vector<1x16xf32>
    %135 = vector.broadcast %133 : vector<16x1xf32> to vector<16x16xf32>
    %136 = vector.broadcast %134 : vector<1x16xf32> to vector<16x16xf32>
    %137 = arith.addf %135, %136 : vector<16x16xf32>
    %cst_44 = arith.constant 2.000000e-01 : f32
    %138 = vector.broadcast %cst_44 : f32 to vector<16x16xf32>
    %139 = arith.mulf %138, %137 : vector<16x16xf32>
    %140 = arith.maximumf %137, %139 : vector<16x16xf32>
    %141 = arith.addf %140, %9 : vector<16x16xf32>
    %cst_45 = arith.constant dense<0xFF800000> : vector<16xf32>
    %142 = vector.multi_reduction <maximumf>, %141, %cst_45 [1] : vector<16x16xf32> to vector<16xf32>
    %143 = vector.shape_cast %142 : vector<16xf32> to vector<16x1xf32>
    %144 = vector.broadcast %143 : vector<16x1xf32> to vector<16x16xf32>
    %145 = arith.subf %141, %144 : vector<16x16xf32>
    %146 = math.exp %145 : vector<16x16xf32>
    %cst_46 = arith.constant dense<0.000000e+00> : vector<16xf32>
    %147 = vector.multi_reduction <add>, %146, %cst_46 [1] : vector<16x16xf32> to vector<16xf32>
    %148 = vector.shape_cast %147 : vector<16xf32> to vector<16x1xf32>
    %149 = tpu.reciprocal %148 {approx = true} : vector<16x1xf32> -> vector<16x1xf32>
    %150 = vector.broadcast %149 : vector<16x1xf32> to vector<16x16xf32>
    %151 = arith.mulf %146, %150 : vector<16x16xf32>
    %152 = vector.extract_strided_slice %30 {offsets = [0, 96], sizes = [16, 32], strides = [1, 1]} : vector<16x128xf32> to vector<16x32xf32>
    %153 = arith.truncf %151 : vector<16x16xf32> to vector<16x16xbf16>
    %154 = arith.truncf %152 : vector<16x32xf32> to vector<16x32xbf16>
    %cst_47 = arith.constant dense<0.000000e+00> : vector<16x32xf32>
    %155 = tpu.matmul %153, %154, %cst_47 {dimension_numbers = #tpu.dot_dimension_numbers<[1], [0], [0], [1], [0, 0, 1, 1], [], []>} : vector<16x16xbf16>, vector<16x32xbf16>, vector<16x32xf32> -> vector<16x32xf32>
    %cst_48 = arith.constant 0.000000e+00 : f32
    %156 = vector.shape_cast %4 : vector<16x1xi1> to vector<16x1xi1>
    %157 = vector.broadcast %156 : vector<16x1xi1> to vector<16x32xi1>
    %158 = vector.broadcast %cst_48 : f32 to vector<16x32xf32>
    %159 = arith.select %157, %155, %158 : vector<16x32xi1>, vector<16x32xf32>
    %160 = vector.extract_strided_slice %15 {offsets = [0, 96], sizes = [1, 32], strides = [1, 1]} : vector<1x128xf32> to vector<1x32xf32>
    %161 = vector.broadcast %160 : vector<1x32xf32> to vector<16x32xf32>
    %162 = arith.addf %159, %161 : vector<16x32xf32>
    %cst_49 = arith.constant 0.000000e+00 : f32
    %163 = vector.broadcast %cst_49 : f32 to vector<16x32xf32>
    %164 = arith.maximumf %162, %163 : vector<16x32xf32>
    %165 = arith.addf %132, %164 : vector<16x32xf32>
    %cst_50 = arith.constant 2.500000e-01 : f32
    %166 = vector.broadcast %cst_50 : f32 to vector<16x32xf32>
    %167 = arith.mulf %165, %166 : vector<16x32xf32>
    %c0_51 = arith.constant 0 : index
    %c0_52 = arith.constant 0 : index
    %168 = vector.load %arg10[%c0_51, %c0_52] : memref<32x64xbf16, #tpu.memory_space<vmem>>, vector<32x64xbf16>
    %c0_53 = arith.constant 0 : index
    %c0_54 = arith.constant 0 : index
    %169 = vector.load %arg11[%c0_53, %c0_54] : memref<1x32xf32, #tpu.memory_space<vmem>>, vector<1x32xf32>
    %c0_55 = arith.constant 0 : index
    %c0_56 = arith.constant 0 : index
    %170 = vector.load %arg12[%c0_55, %c0_56] : memref<32x128xbf16, #tpu.memory_space<vmem>>, vector<32x128xbf16>
    %c0_57 = arith.constant 0 : index
    %c0_58 = arith.constant 0 : index
    %171 = vector.load %arg13[%c0_57, %c0_58] : memref<4x128xf32, #tpu.memory_space<vmem>>, vector<4x128xf32>
    %c0_59 = arith.constant 0 : index
    %c0_60 = arith.constant 0 : index
    %172 = vector.load %arg14[%c0_59, %c0_60] : memref<128x4xf32, #tpu.memory_space<vmem>>, vector<128x4xf32>
    %c0_61 = arith.constant 0 : index
    %c0_62 = arith.constant 0 : index
    %173 = vector.load %arg15[%c0_61, %c0_62] : memref<1x128xf32, #tpu.memory_space<vmem>>, vector<1x128xf32>
    %174 = arith.truncf %167 : vector<16x32xf32> to vector<16x32xbf16>
    %cst_63 = arith.constant dense<0.000000e+00> : vector<16x64xf32>
    %175 = tpu.matmul %174, %168, %cst_63 {dimension_numbers = #tpu.dot_dimension_numbers<[1], [0], [0], [1], [0, 0, 1, 1], [], []>} : vector<16x32xbf16>, vector<32x64xbf16>, vector<16x64xf32> -> vector<16x64xf32>
    %176 = vector.extract_strided_slice %175 {offsets = [0, 0], sizes = [16, 32], strides = [1, 1]} : vector<16x64xf32> to vector<16x32xf32>
    %177 = vector.extract_strided_slice %175 {offsets = [0, 32], sizes = [16, 32], strides = [1, 1]} : vector<16x64xf32> to vector<16x32xf32>
    %178 = arith.truncf %176 : vector<16x32xf32> to vector<16x32xbf16>
    %cst_64 = arith.constant dense<0.000000e+00> : vector<16x32xf32>
    %179 = tpu.matmul %1, %178, %cst_64 {dimension_numbers = #tpu.dot_dimension_numbers<[1], [0], [0], [1], [0, 0, 1, 1], [], []>} : vector<16x16xbf16>, vector<16x32xbf16>, vector<16x32xf32> -> vector<16x32xf32>
    %180 = vector.broadcast %2 : vector<16x1xf32> to vector<16x32xf32>
    %181 = arith.mulf %179, %180 : vector<16x32xf32>
    %182 = arith.addf %181, %177 : vector<16x32xf32>
    %183 = vector.broadcast %169 : vector<1x32xf32> to vector<16x32xf32>
    %184 = arith.addf %182, %183 : vector<16x32xf32>
    %cst_65 = arith.constant 0.000000e+00 : f32
    %185 = vector.broadcast %cst_65 : f32 to vector<16x32xf32>
    %186 = arith.maximumf %184, %185 : vector<16x32xf32>
    %187 = arith.truncf %186 : vector<16x32xf32> to vector<16x32xbf16>
    %cst_66 = arith.constant dense<0.000000e+00> : vector<16x128xf32>
    %188 = tpu.matmul %187, %170, %cst_66 {dimension_numbers = #tpu.dot_dimension_numbers<[1], [0], [0], [1], [0, 0, 1, 1], [], []>} : vector<16x32xbf16>, vector<32x128xbf16>, vector<16x128xf32> -> vector<16x128xf32>
    %cst_67 = arith.constant dense<0.000000e+00> : vector<16x4xf32>
    %189 = tpu.matmul %188, %172, %cst_67 {dimension_numbers = #tpu.dot_dimension_numbers<[1], [0], [0], [1], [0, 0, 1, 1], [], []>} : vector<16x128xf32>, vector<128x4xf32>, vector<16x4xf32> -> vector<16x4xf32>
    %cst_68 = arith.constant dense<0.000000e+00> : vector<4x16xf32>
    %190 = tpu.matmul %171, %188, %cst_68 {dimension_numbers = #tpu.dot_dimension_numbers<[1], [1], [0], [0], [0, 0, 1, 0], [], []>} : vector<4x128xf32>, vector<16x128xf32>, vector<4x16xf32> -> vector<4x16xf32>
    %cst_69 = arith.constant 0.000000e+00 : f32
    %191 = vector.broadcast %cst_69 : f32 to vector<16x32xf32>
    %192 = vector.extract_strided_slice %189 {offsets = [0, 0], sizes = [16, 1], strides = [1, 1]} : vector<16x4xf32> to vector<16x1xf32>
    %193 = vector.extract_strided_slice %190 {offsets = [0, 0], sizes = [1, 16], strides = [1, 1]} : vector<4x16xf32> to vector<1x16xf32>
    %194 = vector.broadcast %192 : vector<16x1xf32> to vector<16x16xf32>
    %195 = vector.broadcast %193 : vector<1x16xf32> to vector<16x16xf32>
    %196 = arith.addf %194, %195 : vector<16x16xf32>
    %cst_70 = arith.constant 2.000000e-01 : f32
    %197 = vector.broadcast %cst_70 : f32 to vector<16x16xf32>
    %198 = arith.mulf %197, %196 : vector<16x16xf32>
    %199 = arith.maximumf %196, %198 : vector<16x16xf32>
    %200 = arith.addf %199, %9 : vector<16x16xf32>
    %cst_71 = arith.constant dense<0xFF800000> : vector<16xf32>
    %201 = vector.multi_reduction <maximumf>, %200, %cst_71 [1] : vector<16x16xf32> to vector<16xf32>
    %202 = vector.shape_cast %201 : vector<16xf32> to vector<16x1xf32>
    %203 = vector.broadcast %202 : vector<16x1xf32> to vector<16x16xf32>
    %204 = arith.subf %200, %203 : vector<16x16xf32>
    %205 = math.exp %204 : vector<16x16xf32>
    %cst_72 = arith.constant dense<0.000000e+00> : vector<16xf32>
    %206 = vector.multi_reduction <add>, %205, %cst_72 [1] : vector<16x16xf32> to vector<16xf32>
    %207 = vector.shape_cast %206 : vector<16xf32> to vector<16x1xf32>
    %208 = tpu.reciprocal %207 {approx = true} : vector<16x1xf32> -> vector<16x1xf32>
    %209 = vector.broadcast %208 : vector<16x1xf32> to vector<16x16xf32>
    %210 = arith.mulf %205, %209 : vector<16x16xf32>
    %211 = vector.extract_strided_slice %188 {offsets = [0, 0], sizes = [16, 32], strides = [1, 1]} : vector<16x128xf32> to vector<16x32xf32>
    %212 = arith.truncf %210 : vector<16x16xf32> to vector<16x16xbf16>
    %213 = arith.truncf %211 : vector<16x32xf32> to vector<16x32xbf16>
    %cst_73 = arith.constant dense<0.000000e+00> : vector<16x32xf32>
    %214 = tpu.matmul %212, %213, %cst_73 {dimension_numbers = #tpu.dot_dimension_numbers<[1], [0], [0], [1], [0, 0, 1, 1], [], []>} : vector<16x16xbf16>, vector<16x32xbf16>, vector<16x32xf32> -> vector<16x32xf32>
    %cst_74 = arith.constant 0.000000e+00 : f32
    %215 = vector.shape_cast %4 : vector<16x1xi1> to vector<16x1xi1>
    %216 = vector.broadcast %215 : vector<16x1xi1> to vector<16x32xi1>
    %217 = vector.broadcast %cst_74 : f32 to vector<16x32xf32>
    %218 = arith.select %216, %214, %217 : vector<16x32xi1>, vector<16x32xf32>
    %219 = vector.extract_strided_slice %173 {offsets = [0, 0], sizes = [1, 32], strides = [1, 1]} : vector<1x128xf32> to vector<1x32xf32>
    %220 = vector.broadcast %219 : vector<1x32xf32> to vector<16x32xf32>
    %221 = arith.addf %218, %220 : vector<16x32xf32>
    %cst_75 = arith.constant 0.000000e+00 : f32
    %222 = vector.broadcast %cst_75 : f32 to vector<16x32xf32>
    %223 = arith.maximumf %221, %222 : vector<16x32xf32>
    %224 = arith.addf %191, %223 : vector<16x32xf32>
    %225 = vector.extract_strided_slice %189 {offsets = [0, 1], sizes = [16, 1], strides = [1, 1]} : vector<16x4xf32> to vector<16x1xf32>
    %226 = vector.extract_strided_slice %190 {offsets = [1, 0], sizes = [1, 16], strides = [1, 1]} : vector<4x16xf32> to vector<1x16xf32>
    %227 = vector.broadcast %225 : vector<16x1xf32> to vector<16x16xf32>
    %228 = vector.broadcast %226 : vector<1x16xf32> to vector<16x16xf32>
    %229 = arith.addf %227, %228 : vector<16x16xf32>
    %cst_76 = arith.constant 2.000000e-01 : f32
    %230 = vector.broadcast %cst_76 : f32 to vector<16x16xf32>
    %231 = arith.mulf %230, %229 : vector<16x16xf32>
    %232 = arith.maximumf %229, %231 : vector<16x16xf32>
    %233 = arith.addf %232, %9 : vector<16x16xf32>
    %cst_77 = arith.constant dense<0xFF800000> : vector<16xf32>
    %234 = vector.multi_reduction <maximumf>, %233, %cst_77 [1] : vector<16x16xf32> to vector<16xf32>
    %235 = vector.shape_cast %234 : vector<16xf32> to vector<16x1xf32>
    %236 = vector.broadcast %235 : vector<16x1xf32> to vector<16x16xf32>
    %237 = arith.subf %233, %236 : vector<16x16xf32>
    %238 = math.exp %237 : vector<16x16xf32>
    %cst_78 = arith.constant dense<0.000000e+00> : vector<16xf32>
    %239 = vector.multi_reduction <add>, %238, %cst_78 [1] : vector<16x16xf32> to vector<16xf32>
    %240 = vector.shape_cast %239 : vector<16xf32> to vector<16x1xf32>
    %241 = tpu.reciprocal %240 {approx = true} : vector<16x1xf32> -> vector<16x1xf32>
    %242 = vector.broadcast %241 : vector<16x1xf32> to vector<16x16xf32>
    %243 = arith.mulf %238, %242 : vector<16x16xf32>
    %244 = vector.extract_strided_slice %188 {offsets = [0, 32], sizes = [16, 32], strides = [1, 1]} : vector<16x128xf32> to vector<16x32xf32>
    %245 = arith.truncf %243 : vector<16x16xf32> to vector<16x16xbf16>
    %246 = arith.truncf %244 : vector<16x32xf32> to vector<16x32xbf16>
    %cst_79 = arith.constant dense<0.000000e+00> : vector<16x32xf32>
    %247 = tpu.matmul %245, %246, %cst_79 {dimension_numbers = #tpu.dot_dimension_numbers<[1], [0], [0], [1], [0, 0, 1, 1], [], []>} : vector<16x16xbf16>, vector<16x32xbf16>, vector<16x32xf32> -> vector<16x32xf32>
    %cst_80 = arith.constant 0.000000e+00 : f32
    %248 = vector.shape_cast %4 : vector<16x1xi1> to vector<16x1xi1>
    %249 = vector.broadcast %248 : vector<16x1xi1> to vector<16x32xi1>
    %250 = vector.broadcast %cst_80 : f32 to vector<16x32xf32>
    %251 = arith.select %249, %247, %250 : vector<16x32xi1>, vector<16x32xf32>
    %252 = vector.extract_strided_slice %173 {offsets = [0, 32], sizes = [1, 32], strides = [1, 1]} : vector<1x128xf32> to vector<1x32xf32>
    %253 = vector.broadcast %252 : vector<1x32xf32> to vector<16x32xf32>
    %254 = arith.addf %251, %253 : vector<16x32xf32>
    %cst_81 = arith.constant 0.000000e+00 : f32
    %255 = vector.broadcast %cst_81 : f32 to vector<16x32xf32>
    %256 = arith.maximumf %254, %255 : vector<16x32xf32>
    %257 = arith.addf %224, %256 : vector<16x32xf32>
    %258 = vector.extract_strided_slice %189 {offsets = [0, 2], sizes = [16, 1], strides = [1, 1]} : vector<16x4xf32> to vector<16x1xf32>
    %259 = vector.extract_strided_slice %190 {offsets = [2, 0], sizes = [1, 16], strides = [1, 1]} : vector<4x16xf32> to vector<1x16xf32>
    %260 = vector.broadcast %258 : vector<16x1xf32> to vector<16x16xf32>
    %261 = vector.broadcast %259 : vector<1x16xf32> to vector<16x16xf32>
    %262 = arith.addf %260, %261 : vector<16x16xf32>
    %cst_82 = arith.constant 2.000000e-01 : f32
    %263 = vector.broadcast %cst_82 : f32 to vector<16x16xf32>
    %264 = arith.mulf %263, %262 : vector<16x16xf32>
    %265 = arith.maximumf %262, %264 : vector<16x16xf32>
    %266 = arith.addf %265, %9 : vector<16x16xf32>
    %cst_83 = arith.constant dense<0xFF800000> : vector<16xf32>
    %267 = vector.multi_reduction <maximumf>, %266, %cst_83 [1] : vector<16x16xf32> to vector<16xf32>
    %268 = vector.shape_cast %267 : vector<16xf32> to vector<16x1xf32>
    %269 = vector.broadcast %268 : vector<16x1xf32> to vector<16x16xf32>
    %270 = arith.subf %266, %269 : vector<16x16xf32>
    %271 = math.exp %270 : vector<16x16xf32>
    %cst_84 = arith.constant dense<0.000000e+00> : vector<16xf32>
    %272 = vector.multi_reduction <add>, %271, %cst_84 [1] : vector<16x16xf32> to vector<16xf32>
    %273 = vector.shape_cast %272 : vector<16xf32> to vector<16x1xf32>
    %274 = tpu.reciprocal %273 {approx = true} : vector<16x1xf32> -> vector<16x1xf32>
    %275 = vector.broadcast %274 : vector<16x1xf32> to vector<16x16xf32>
    %276 = arith.mulf %271, %275 : vector<16x16xf32>
    %277 = vector.extract_strided_slice %188 {offsets = [0, 64], sizes = [16, 32], strides = [1, 1]} : vector<16x128xf32> to vector<16x32xf32>
    %278 = arith.truncf %276 : vector<16x16xf32> to vector<16x16xbf16>
    %279 = arith.truncf %277 : vector<16x32xf32> to vector<16x32xbf16>
    %cst_85 = arith.constant dense<0.000000e+00> : vector<16x32xf32>
    %280 = tpu.matmul %278, %279, %cst_85 {dimension_numbers = #tpu.dot_dimension_numbers<[1], [0], [0], [1], [0, 0, 1, 1], [], []>} : vector<16x16xbf16>, vector<16x32xbf16>, vector<16x32xf32> -> vector<16x32xf32>
    %cst_86 = arith.constant 0.000000e+00 : f32
    %281 = vector.shape_cast %4 : vector<16x1xi1> to vector<16x1xi1>
    %282 = vector.broadcast %281 : vector<16x1xi1> to vector<16x32xi1>
    %283 = vector.broadcast %cst_86 : f32 to vector<16x32xf32>
    %284 = arith.select %282, %280, %283 : vector<16x32xi1>, vector<16x32xf32>
    %285 = vector.extract_strided_slice %173 {offsets = [0, 64], sizes = [1, 32], strides = [1, 1]} : vector<1x128xf32> to vector<1x32xf32>
    %286 = vector.broadcast %285 : vector<1x32xf32> to vector<16x32xf32>
    %287 = arith.addf %284, %286 : vector<16x32xf32>
    %cst_87 = arith.constant 0.000000e+00 : f32
    %288 = vector.broadcast %cst_87 : f32 to vector<16x32xf32>
    %289 = arith.maximumf %287, %288 : vector<16x32xf32>
    %290 = arith.addf %257, %289 : vector<16x32xf32>
    %291 = vector.extract_strided_slice %189 {offsets = [0, 3], sizes = [16, 1], strides = [1, 1]} : vector<16x4xf32> to vector<16x1xf32>
    %292 = vector.extract_strided_slice %190 {offsets = [3, 0], sizes = [1, 16], strides = [1, 1]} : vector<4x16xf32> to vector<1x16xf32>
    %293 = vector.broadcast %291 : vector<16x1xf32> to vector<16x16xf32>
    %294 = vector.broadcast %292 : vector<1x16xf32> to vector<16x16xf32>
    %295 = arith.addf %293, %294 : vector<16x16xf32>
    %cst_88 = arith.constant 2.000000e-01 : f32
    %296 = vector.broadcast %cst_88 : f32 to vector<16x16xf32>
    %297 = arith.mulf %296, %295 : vector<16x16xf32>
    %298 = arith.maximumf %295, %297 : vector<16x16xf32>
    %299 = arith.addf %298, %9 : vector<16x16xf32>
    %cst_89 = arith.constant dense<0xFF800000> : vector<16xf32>
    %300 = vector.multi_reduction <maximumf>, %299, %cst_89 [1] : vector<16x16xf32> to vector<16xf32>
    %301 = vector.shape_cast %300 : vector<16xf32> to vector<16x1xf32>
    %302 = vector.broadcast %301 : vector<16x1xf32> to vector<16x16xf32>
    %303 = arith.subf %299, %302 : vector<16x16xf32>
    %304 = math.exp %303 : vector<16x16xf32>
    %cst_90 = arith.constant dense<0.000000e+00> : vector<16xf32>
    %305 = vector.multi_reduction <add>, %304, %cst_90 [1] : vector<16x16xf32> to vector<16xf32>
    %306 = vector.shape_cast %305 : vector<16xf32> to vector<16x1xf32>
    %307 = tpu.reciprocal %306 {approx = true} : vector<16x1xf32> -> vector<16x1xf32>
    %308 = vector.broadcast %307 : vector<16x1xf32> to vector<16x16xf32>
    %309 = arith.mulf %304, %308 : vector<16x16xf32>
    %310 = vector.extract_strided_slice %188 {offsets = [0, 96], sizes = [16, 32], strides = [1, 1]} : vector<16x128xf32> to vector<16x32xf32>
    %311 = arith.truncf %309 : vector<16x16xf32> to vector<16x16xbf16>
    %312 = arith.truncf %310 : vector<16x32xf32> to vector<16x32xbf16>
    %cst_91 = arith.constant dense<0.000000e+00> : vector<16x32xf32>
    %313 = tpu.matmul %311, %312, %cst_91 {dimension_numbers = #tpu.dot_dimension_numbers<[1], [0], [0], [1], [0, 0, 1, 1], [], []>} : vector<16x16xbf16>, vector<16x32xbf16>, vector<16x32xf32> -> vector<16x32xf32>
    %cst_92 = arith.constant 0.000000e+00 : f32
    %314 = vector.shape_cast %4 : vector<16x1xi1> to vector<16x1xi1>
    %315 = vector.broadcast %314 : vector<16x1xi1> to vector<16x32xi1>
    %316 = vector.broadcast %cst_92 : f32 to vector<16x32xf32>
    %317 = arith.select %315, %313, %316 : vector<16x32xi1>, vector<16x32xf32>
    %318 = vector.extract_strided_slice %173 {offsets = [0, 96], sizes = [1, 32], strides = [1, 1]} : vector<1x128xf32> to vector<1x32xf32>
    %319 = vector.broadcast %318 : vector<1x32xf32> to vector<16x32xf32>
    %320 = arith.addf %317, %319 : vector<16x32xf32>
    %cst_93 = arith.constant 0.000000e+00 : f32
    %321 = vector.broadcast %cst_93 : f32 to vector<16x32xf32>
    %322 = arith.maximumf %320, %321 : vector<16x32xf32>
    %323 = arith.addf %290, %322 : vector<16x32xf32>
    %cst_94 = arith.constant 2.500000e-01 : f32
    %324 = vector.broadcast %cst_94 : f32 to vector<16x32xf32>
    %325 = arith.mulf %323, %324 : vector<16x32xf32>
    %c0_95 = arith.constant 0 : index
    %c0_96 = arith.constant 0 : index
    %326 = vector.load %arg16[%c0_95, %c0_96] : memref<32x64xbf16, #tpu.memory_space<vmem>>, vector<32x64xbf16>
    %c0_97 = arith.constant 0 : index
    %c0_98 = arith.constant 0 : index
    %327 = vector.load %arg17[%c0_97, %c0_98] : memref<1x32xf32, #tpu.memory_space<vmem>>, vector<1x32xf32>
    %c0_99 = arith.constant 0 : index
    %c0_100 = arith.constant 0 : index
    %328 = vector.load %arg18[%c0_99, %c0_100] : memref<32x128xbf16, #tpu.memory_space<vmem>>, vector<32x128xbf16>
    %c0_101 = arith.constant 0 : index
    %c0_102 = arith.constant 0 : index
    %329 = vector.load %arg19[%c0_101, %c0_102] : memref<4x128xf32, #tpu.memory_space<vmem>>, vector<4x128xf32>
    %c0_103 = arith.constant 0 : index
    %c0_104 = arith.constant 0 : index
    %330 = vector.load %arg20[%c0_103, %c0_104] : memref<128x4xf32, #tpu.memory_space<vmem>>, vector<128x4xf32>
    %c0_105 = arith.constant 0 : index
    %c0_106 = arith.constant 0 : index
    %331 = vector.load %arg21[%c0_105, %c0_106] : memref<1x128xf32, #tpu.memory_space<vmem>>, vector<1x128xf32>
    %332 = arith.truncf %325 : vector<16x32xf32> to vector<16x32xbf16>
    %cst_107 = arith.constant dense<0.000000e+00> : vector<16x64xf32>
    %333 = tpu.matmul %332, %326, %cst_107 {dimension_numbers = #tpu.dot_dimension_numbers<[1], [0], [0], [1], [0, 0, 1, 1], [], []>} : vector<16x32xbf16>, vector<32x64xbf16>, vector<16x64xf32> -> vector<16x64xf32>
    %334 = vector.extract_strided_slice %333 {offsets = [0, 0], sizes = [16, 32], strides = [1, 1]} : vector<16x64xf32> to vector<16x32xf32>
    %335 = vector.extract_strided_slice %333 {offsets = [0, 32], sizes = [16, 32], strides = [1, 1]} : vector<16x64xf32> to vector<16x32xf32>
    %336 = arith.truncf %334 : vector<16x32xf32> to vector<16x32xbf16>
    %cst_108 = arith.constant dense<0.000000e+00> : vector<16x32xf32>
    %337 = tpu.matmul %1, %336, %cst_108 {dimension_numbers = #tpu.dot_dimension_numbers<[1], [0], [0], [1], [0, 0, 1, 1], [], []>} : vector<16x16xbf16>, vector<16x32xbf16>, vector<16x32xf32> -> vector<16x32xf32>
    %338 = vector.broadcast %2 : vector<16x1xf32> to vector<16x32xf32>
    %339 = arith.mulf %337, %338 : vector<16x32xf32>
    %340 = arith.addf %339, %335 : vector<16x32xf32>
    %341 = vector.broadcast %327 : vector<1x32xf32> to vector<16x32xf32>
    %342 = arith.addf %340, %341 : vector<16x32xf32>
    %cst_109 = arith.constant 0.000000e+00 : f32
    %343 = vector.broadcast %cst_109 : f32 to vector<16x32xf32>
    %344 = arith.maximumf %342, %343 : vector<16x32xf32>
    %345 = arith.truncf %344 : vector<16x32xf32> to vector<16x32xbf16>
    %cst_110 = arith.constant dense<0.000000e+00> : vector<16x128xf32>
    %346 = tpu.matmul %345, %328, %cst_110 {dimension_numbers = #tpu.dot_dimension_numbers<[1], [0], [0], [1], [0, 0, 1, 1], [], []>} : vector<16x32xbf16>, vector<32x128xbf16>, vector<16x128xf32> -> vector<16x128xf32>
    %cst_111 = arith.constant dense<0.000000e+00> : vector<16x4xf32>
    %347 = tpu.matmul %346, %330, %cst_111 {dimension_numbers = #tpu.dot_dimension_numbers<[1], [0], [0], [1], [0, 0, 1, 1], [], []>} : vector<16x128xf32>, vector<128x4xf32>, vector<16x4xf32> -> vector<16x4xf32>
    %cst_112 = arith.constant dense<0.000000e+00> : vector<4x16xf32>
    %348 = tpu.matmul %329, %346, %cst_112 {dimension_numbers = #tpu.dot_dimension_numbers<[1], [1], [0], [0], [0, 0, 1, 0], [], []>} : vector<4x128xf32>, vector<16x128xf32>, vector<4x16xf32> -> vector<4x16xf32>
    %cst_113 = arith.constant 0.000000e+00 : f32
    %349 = vector.broadcast %cst_113 : f32 to vector<16x32xf32>
    %350 = vector.extract_strided_slice %347 {offsets = [0, 0], sizes = [16, 1], strides = [1, 1]} : vector<16x4xf32> to vector<16x1xf32>
    %351 = vector.extract_strided_slice %348 {offsets = [0, 0], sizes = [1, 16], strides = [1, 1]} : vector<4x16xf32> to vector<1x16xf32>
    %352 = vector.broadcast %350 : vector<16x1xf32> to vector<16x16xf32>
    %353 = vector.broadcast %351 : vector<1x16xf32> to vector<16x16xf32>
    %354 = arith.addf %352, %353 : vector<16x16xf32>
    %cst_114 = arith.constant 2.000000e-01 : f32
    %355 = vector.broadcast %cst_114 : f32 to vector<16x16xf32>
    %356 = arith.mulf %355, %354 : vector<16x16xf32>
    %357 = arith.maximumf %354, %356 : vector<16x16xf32>
    %358 = arith.addf %357, %9 : vector<16x16xf32>
    %cst_115 = arith.constant dense<0xFF800000> : vector<16xf32>
    %359 = vector.multi_reduction <maximumf>, %358, %cst_115 [1] : vector<16x16xf32> to vector<16xf32>
    %360 = vector.shape_cast %359 : vector<16xf32> to vector<16x1xf32>
    %361 = vector.broadcast %360 : vector<16x1xf32> to vector<16x16xf32>
    %362 = arith.subf %358, %361 : vector<16x16xf32>
    %363 = math.exp %362 : vector<16x16xf32>
    %cst_116 = arith.constant dense<0.000000e+00> : vector<16xf32>
    %364 = vector.multi_reduction <add>, %363, %cst_116 [1] : vector<16x16xf32> to vector<16xf32>
    %365 = vector.shape_cast %364 : vector<16xf32> to vector<16x1xf32>
    %366 = tpu.reciprocal %365 {approx = true} : vector<16x1xf32> -> vector<16x1xf32>
    %367 = vector.broadcast %366 : vector<16x1xf32> to vector<16x16xf32>
    %368 = arith.mulf %363, %367 : vector<16x16xf32>
    %369 = vector.extract_strided_slice %346 {offsets = [0, 0], sizes = [16, 32], strides = [1, 1]} : vector<16x128xf32> to vector<16x32xf32>
    %370 = arith.truncf %368 : vector<16x16xf32> to vector<16x16xbf16>
    %371 = arith.truncf %369 : vector<16x32xf32> to vector<16x32xbf16>
    %cst_117 = arith.constant dense<0.000000e+00> : vector<16x32xf32>
    %372 = tpu.matmul %370, %371, %cst_117 {dimension_numbers = #tpu.dot_dimension_numbers<[1], [0], [0], [1], [0, 0, 1, 1], [], []>} : vector<16x16xbf16>, vector<16x32xbf16>, vector<16x32xf32> -> vector<16x32xf32>
    %cst_118 = arith.constant 0.000000e+00 : f32
    %373 = vector.shape_cast %4 : vector<16x1xi1> to vector<16x1xi1>
    %374 = vector.broadcast %373 : vector<16x1xi1> to vector<16x32xi1>
    %375 = vector.broadcast %cst_118 : f32 to vector<16x32xf32>
    %376 = arith.select %374, %372, %375 : vector<16x32xi1>, vector<16x32xf32>
    %377 = vector.extract_strided_slice %331 {offsets = [0, 0], sizes = [1, 32], strides = [1, 1]} : vector<1x128xf32> to vector<1x32xf32>
    %378 = vector.broadcast %377 : vector<1x32xf32> to vector<16x32xf32>
    %379 = arith.addf %376, %378 : vector<16x32xf32>
    %cst_119 = arith.constant 0.000000e+00 : f32
    %380 = vector.broadcast %cst_119 : f32 to vector<16x32xf32>
    %381 = arith.maximumf %379, %380 : vector<16x32xf32>
    %382 = arith.addf %349, %381 : vector<16x32xf32>
    %383 = vector.extract_strided_slice %347 {offsets = [0, 1], sizes = [16, 1], strides = [1, 1]} : vector<16x4xf32> to vector<16x1xf32>
    %384 = vector.extract_strided_slice %348 {offsets = [1, 0], sizes = [1, 16], strides = [1, 1]} : vector<4x16xf32> to vector<1x16xf32>
    %385 = vector.broadcast %383 : vector<16x1xf32> to vector<16x16xf32>
    %386 = vector.broadcast %384 : vector<1x16xf32> to vector<16x16xf32>
    %387 = arith.addf %385, %386 : vector<16x16xf32>
    %cst_120 = arith.constant 2.000000e-01 : f32
    %388 = vector.broadcast %cst_120 : f32 to vector<16x16xf32>
    %389 = arith.mulf %388, %387 : vector<16x16xf32>
    %390 = arith.maximumf %387, %389 : vector<16x16xf32>
    %391 = arith.addf %390, %9 : vector<16x16xf32>
    %cst_121 = arith.constant dense<0xFF800000> : vector<16xf32>
    %392 = vector.multi_reduction <maximumf>, %391, %cst_121 [1] : vector<16x16xf32> to vector<16xf32>
    %393 = vector.shape_cast %392 : vector<16xf32> to vector<16x1xf32>
    %394 = vector.broadcast %393 : vector<16x1xf32> to vector<16x16xf32>
    %395 = arith.subf %391, %394 : vector<16x16xf32>
    %396 = math.exp %395 : vector<16x16xf32>
    %cst_122 = arith.constant dense<0.000000e+00> : vector<16xf32>
    %397 = vector.multi_reduction <add>, %396, %cst_122 [1] : vector<16x16xf32> to vector<16xf32>
    %398 = vector.shape_cast %397 : vector<16xf32> to vector<16x1xf32>
    %399 = tpu.reciprocal %398 {approx = true} : vector<16x1xf32> -> vector<16x1xf32>
    %400 = vector.broadcast %399 : vector<16x1xf32> to vector<16x16xf32>
    %401 = arith.mulf %396, %400 : vector<16x16xf32>
    %402 = vector.extract_strided_slice %346 {offsets = [0, 32], sizes = [16, 32], strides = [1, 1]} : vector<16x128xf32> to vector<16x32xf32>
    %403 = arith.truncf %401 : vector<16x16xf32> to vector<16x16xbf16>
    %404 = arith.truncf %402 : vector<16x32xf32> to vector<16x32xbf16>
    %cst_123 = arith.constant dense<0.000000e+00> : vector<16x32xf32>
    %405 = tpu.matmul %403, %404, %cst_123 {dimension_numbers = #tpu.dot_dimension_numbers<[1], [0], [0], [1], [0, 0, 1, 1], [], []>} : vector<16x16xbf16>, vector<16x32xbf16>, vector<16x32xf32> -> vector<16x32xf32>
    %cst_124 = arith.constant 0.000000e+00 : f32
    %406 = vector.shape_cast %4 : vector<16x1xi1> to vector<16x1xi1>
    %407 = vector.broadcast %406 : vector<16x1xi1> to vector<16x32xi1>
    %408 = vector.broadcast %cst_124 : f32 to vector<16x32xf32>
    %409 = arith.select %407, %405, %408 : vector<16x32xi1>, vector<16x32xf32>
    %410 = vector.extract_strided_slice %331 {offsets = [0, 32], sizes = [1, 32], strides = [1, 1]} : vector<1x128xf32> to vector<1x32xf32>
    %411 = vector.broadcast %410 : vector<1x32xf32> to vector<16x32xf32>
    %412 = arith.addf %409, %411 : vector<16x32xf32>
    %cst_125 = arith.constant 0.000000e+00 : f32
    %413 = vector.broadcast %cst_125 : f32 to vector<16x32xf32>
    %414 = arith.maximumf %412, %413 : vector<16x32xf32>
    %415 = arith.addf %382, %414 : vector<16x32xf32>
    %416 = vector.extract_strided_slice %347 {offsets = [0, 2], sizes = [16, 1], strides = [1, 1]} : vector<16x4xf32> to vector<16x1xf32>
    %417 = vector.extract_strided_slice %348 {offsets = [2, 0], sizes = [1, 16], strides = [1, 1]} : vector<4x16xf32> to vector<1x16xf32>
    %418 = vector.broadcast %416 : vector<16x1xf32> to vector<16x16xf32>
    %419 = vector.broadcast %417 : vector<1x16xf32> to vector<16x16xf32>
    %420 = arith.addf %418, %419 : vector<16x16xf32>
    %cst_126 = arith.constant 2.000000e-01 : f32
    %421 = vector.broadcast %cst_126 : f32 to vector<16x16xf32>
    %422 = arith.mulf %421, %420 : vector<16x16xf32>
    %423 = arith.maximumf %420, %422 : vector<16x16xf32>
    %424 = arith.addf %423, %9 : vector<16x16xf32>
    %cst_127 = arith.constant dense<0xFF800000> : vector<16xf32>
    %425 = vector.multi_reduction <maximumf>, %424, %cst_127 [1] : vector<16x16xf32> to vector<16xf32>
    %426 = vector.shape_cast %425 : vector<16xf32> to vector<16x1xf32>
    %427 = vector.broadcast %426 : vector<16x1xf32> to vector<16x16xf32>
    %428 = arith.subf %424, %427 : vector<16x16xf32>
    %429 = math.exp %428 : vector<16x16xf32>
    %cst_128 = arith.constant dense<0.000000e+00> : vector<16xf32>
    %430 = vector.multi_reduction <add>, %429, %cst_128 [1] : vector<16x16xf32> to vector<16xf32>
    %431 = vector.shape_cast %430 : vector<16xf32> to vector<16x1xf32>
    %432 = tpu.reciprocal %431 {approx = true} : vector<16x1xf32> -> vector<16x1xf32>
    %433 = vector.broadcast %432 : vector<16x1xf32> to vector<16x16xf32>
    %434 = arith.mulf %429, %433 : vector<16x16xf32>
    %435 = vector.extract_strided_slice %346 {offsets = [0, 64], sizes = [16, 32], strides = [1, 1]} : vector<16x128xf32> to vector<16x32xf32>
    %436 = arith.truncf %434 : vector<16x16xf32> to vector<16x16xbf16>
    %437 = arith.truncf %435 : vector<16x32xf32> to vector<16x32xbf16>
    %cst_129 = arith.constant dense<0.000000e+00> : vector<16x32xf32>
    %438 = tpu.matmul %436, %437, %cst_129 {dimension_numbers = #tpu.dot_dimension_numbers<[1], [0], [0], [1], [0, 0, 1, 1], [], []>} : vector<16x16xbf16>, vector<16x32xbf16>, vector<16x32xf32> -> vector<16x32xf32>
    %cst_130 = arith.constant 0.000000e+00 : f32
    %439 = vector.shape_cast %4 : vector<16x1xi1> to vector<16x1xi1>
    %440 = vector.broadcast %439 : vector<16x1xi1> to vector<16x32xi1>
    %441 = vector.broadcast %cst_130 : f32 to vector<16x32xf32>
    %442 = arith.select %440, %438, %441 : vector<16x32xi1>, vector<16x32xf32>
    %443 = vector.extract_strided_slice %331 {offsets = [0, 64], sizes = [1, 32], strides = [1, 1]} : vector<1x128xf32> to vector<1x32xf32>
    %444 = vector.broadcast %443 : vector<1x32xf32> to vector<16x32xf32>
    %445 = arith.addf %442, %444 : vector<16x32xf32>
    %cst_131 = arith.constant 0.000000e+00 : f32
    %446 = vector.broadcast %cst_131 : f32 to vector<16x32xf32>
    %447 = arith.maximumf %445, %446 : vector<16x32xf32>
    %448 = arith.addf %415, %447 : vector<16x32xf32>
    %449 = vector.extract_strided_slice %347 {offsets = [0, 3], sizes = [16, 1], strides = [1, 1]} : vector<16x4xf32> to vector<16x1xf32>
    %450 = vector.extract_strided_slice %348 {offsets = [3, 0], sizes = [1, 16], strides = [1, 1]} : vector<4x16xf32> to vector<1x16xf32>
    %451 = vector.broadcast %449 : vector<16x1xf32> to vector<16x16xf32>
    %452 = vector.broadcast %450 : vector<1x16xf32> to vector<16x16xf32>
    %453 = arith.addf %451, %452 : vector<16x16xf32>
    %cst_132 = arith.constant 2.000000e-01 : f32
    %454 = vector.broadcast %cst_132 : f32 to vector<16x16xf32>
    %455 = arith.mulf %454, %453 : vector<16x16xf32>
    %456 = arith.maximumf %453, %455 : vector<16x16xf32>
    %457 = arith.addf %456, %9 : vector<16x16xf32>
    %cst_133 = arith.constant dense<0xFF800000> : vector<16xf32>
    %458 = vector.multi_reduction <maximumf>, %457, %cst_133 [1] : vector<16x16xf32> to vector<16xf32>
    %459 = vector.shape_cast %458 : vector<16xf32> to vector<16x1xf32>
    %460 = vector.broadcast %459 : vector<16x1xf32> to vector<16x16xf32>
    %461 = arith.subf %457, %460 : vector<16x16xf32>
    %462 = math.exp %461 : vector<16x16xf32>
    %cst_134 = arith.constant dense<0.000000e+00> : vector<16xf32>
    %463 = vector.multi_reduction <add>, %462, %cst_134 [1] : vector<16x16xf32> to vector<16xf32>
    %464 = vector.shape_cast %463 : vector<16xf32> to vector<16x1xf32>
    %465 = tpu.reciprocal %464 {approx = true} : vector<16x1xf32> -> vector<16x1xf32>
    %466 = vector.broadcast %465 : vector<16x1xf32> to vector<16x16xf32>
    %467 = arith.mulf %462, %466 : vector<16x16xf32>
    %468 = vector.extract_strided_slice %346 {offsets = [0, 96], sizes = [16, 32], strides = [1, 1]} : vector<16x128xf32> to vector<16x32xf32>
    %469 = arith.truncf %467 : vector<16x16xf32> to vector<16x16xbf16>
    %470 = arith.truncf %468 : vector<16x32xf32> to vector<16x32xbf16>
    %cst_135 = arith.constant dense<0.000000e+00> : vector<16x32xf32>
    %471 = tpu.matmul %469, %470, %cst_135 {dimension_numbers = #tpu.dot_dimension_numbers<[1], [0], [0], [1], [0, 0, 1, 1], [], []>} : vector<16x16xbf16>, vector<16x32xbf16>, vector<16x32xf32> -> vector<16x32xf32>
    %cst_136 = arith.constant 0.000000e+00 : f32
    %472 = vector.shape_cast %4 : vector<16x1xi1> to vector<16x1xi1>
    %473 = vector.broadcast %472 : vector<16x1xi1> to vector<16x32xi1>
    %474 = vector.broadcast %cst_136 : f32 to vector<16x32xf32>
    %475 = arith.select %473, %471, %474 : vector<16x32xi1>, vector<16x32xf32>
    %476 = vector.extract_strided_slice %331 {offsets = [0, 96], sizes = [1, 32], strides = [1, 1]} : vector<1x128xf32> to vector<1x32xf32>
    %477 = vector.broadcast %476 : vector<1x32xf32> to vector<16x32xf32>
    %478 = arith.addf %475, %477 : vector<16x32xf32>
    %cst_137 = arith.constant 0.000000e+00 : f32
    %479 = vector.broadcast %cst_137 : f32 to vector<16x32xf32>
    %480 = arith.maximumf %478, %479 : vector<16x32xf32>
    %481 = arith.addf %448, %480 : vector<16x32xf32>
    %cst_138 = arith.constant 2.500000e-01 : f32
    %482 = vector.broadcast %cst_138 : f32 to vector<16x32xf32>
    %483 = arith.mulf %481, %482 : vector<16x32xf32>
    %c0_139 = arith.constant 0 : index
    %c0_140 = arith.constant 0 : index
    %484 = vector.load %arg22[%c0_139, %c0_140] : memref<1x32xf32, #tpu.memory_space<vmem>>, vector<1x32xf32>
    %485 = vector.broadcast %484 : vector<1x32xf32> to vector<16x32xf32>
    %486 = arith.mulf %483, %485 : vector<16x32xf32>
    %cst_141 = arith.constant dense<0.000000e+00> : vector<16xf32>
    %487 = vector.multi_reduction <add>, %486, %cst_141 [1] : vector<16x32xf32> to vector<16xf32>
    %488 = vector.shape_cast %487 : vector<16xf32> to vector<16x1xf32>
    %c0_142 = arith.constant 0 : index
    %c0_143 = arith.constant 0 : index
    %489 = memref.load %arg23[%c0_142, %c0_143] : memref<1x1xf32, #tpu.memory_space<smem>>
    %490 = vector.broadcast %489 : f32 to vector<16x1xf32>
    %491 = arith.addf %488, %490 : vector<16x1xf32>
    %492 = math.exp %491 : vector<16x1xf32>
    %493 = vector.broadcast %492 : vector<16x1xf32> to vector<16x32xf32>
    %494 = arith.mulf %483, %493 : vector<16x32xf32>
    %495 = arith.mulf %494, %494 : vector<16x32xf32>
    %cst_144 = arith.constant dense<0.000000e+00> : vector<16xf32>
    %496 = vector.multi_reduction <add>, %495, %cst_144 [1] : vector<16x32xf32> to vector<16xf32>
    %497 = vector.shape_cast %496 : vector<16xf32> to vector<16x1xf32>
    %cst_145 = arith.constant 1.000000e-24 : f32
    %498 = vector.broadcast %cst_145 : f32 to vector<16x1xf32>
    %499 = arith.maximumf %497, %498 : vector<16x1xf32>
    %500 = math.rsqrt %499 : vector<16x1xf32>
    %501 = vector.broadcast %500 : vector<16x1xf32> to vector<16x32xf32>
    %502 = arith.mulf %494, %501 : vector<16x32xf32>
    %c0_146 = arith.constant 0 : index
    %c0_147 = arith.constant 0 : index
    %503 = vector.load %arg24[%c0_146, %c0_147] : memref<16x32xf32, #tpu.memory_space<vmem>>, vector<16x32xf32>
    tpu.vector_store %arg24[%c0_146, %c0_147], %502 {strides = array<i32>} : memref<16x32xf32, #tpu.memory_space<vmem>>, vector<16x32xf32>,
    return
  }
  func.func @transform_0(%arg0: i32) -> (i32, i32) {
    %c0_i32 = arith.constant 0 : i32
    %c0_i32_0 = arith.constant 0 : i32
    %c0_i32_1 = arith.constant 0 : i32
    return %c0_i32, %c0_i32_0 : i32, i32
  }
  func.func @transform_1(%arg0: i32) -> (i32, i32) {
    %c0_i32 = arith.constant 0 : i32
    %c0_i32_0 = arith.constant 0 : i32
    %c0_i32_1 = arith.constant 0 : i32
    return %c0_i32, %c0_i32_0 : i32, i32
  }
  func.func @transform_2(%arg0: i32) -> (i32, i32) {
    %c0_i32 = arith.constant 0 : i32
    %c0_i32_0 = arith.constant 0 : i32
    %c0_i32_1 = arith.constant 0 : i32
    return %c0_i32, %c0_i32_0 : i32, i32
  }
  func.func @transform_3(%arg0: i32) -> (i32, i32) {
    %c0_i32 = arith.constant 0 : i32
    %c0_i32_0 = arith.constant 0 : i32
    %c0_i32_1 = arith.constant 0 : i32
    return %c0_i32, %c0_i32_0 : i32, i32
  }
  func.func @transform_4(%arg0: i32) -> (i32, i32) {
    %c0_i32 = arith.constant 0 : i32
    %c0_i32_0 = arith.constant 0 : i32
    %c0_i32_1 = arith.constant 0 : i32
    return %c0_i32, %c0_i32_0 : i32, i32
  }
  func.func @transform_5(%arg0: i32) -> (i32, i32) {
    %c0_i32 = arith.constant 0 : i32
    %c0_i32_0 = arith.constant 0 : i32
    %c0_i32_1 = arith.constant 0 : i32
    return %c0_i32, %c0_i32_0 : i32, i32
  }
  func.func @transform_6(%arg0: i32) -> (i32, i32) {
    %c0_i32 = arith.constant 0 : i32
    %c0_i32_0 = arith.constant 0 : i32
    %c0_i32_1 = arith.constant 0 : i32
    return %c0_i32, %c0_i32_0 : i32, i32
  }
  func.func @transform_7(%arg0: i32) -> (i32, i32) {
    %c0_i32 = arith.constant 0 : i32
    %c0_i32_0 = arith.constant 0 : i32
    %c0_i32_1 = arith.constant 0 : i32
    return %c0_i32, %c0_i32_0 : i32, i32
  }
  func.func @transform_8(%arg0: i32) -> (i32, i32) {
    %c0_i32 = arith.constant 0 : i32
    %c0_i32_0 = arith.constant 0 : i32
    %c0_i32_1 = arith.constant 0 : i32
    return %c0_i32, %c0_i32_0 : i32, i32
  }
  func.func @transform_9(%arg0: i32) -> (i32, i32) {
    %c0_i32 = arith.constant 0 : i32
    %c0_i32_0 = arith.constant 0 : i32
    %c0_i32_1 = arith.constant 0 : i32
    return %c0_i32, %c0_i32_0 : i32, i32
  }
  func.func @transform_10(%arg0: i32) -> (i32, i32) {
    %c0_i32 = arith.constant 0 : i32
    %c0_i32_0 = arith.constant 0 : i32
    %c0_i32_1 = arith.constant 0 : i32
    return %c0_i32, %c0_i32_0 : i32, i32
  }
  func.func @transform_11(%arg0: i32) -> (i32, i32) {
    %c0_i32 = arith.constant 0 : i32
    %c0_i32_0 = arith.constant 0 : i32
    %c0_i32_1 = arith.constant 0 : i32
    return %c0_i32, %c0_i32_0 : i32, i32
  }
  func.func @transform_12(%arg0: i32) -> (i32, i32) {
    %c0_i32 = arith.constant 0 : i32
    %c0_i32_0 = arith.constant 0 : i32
    %c0_i32_1 = arith.constant 0 : i32
    return %c0_i32, %c0_i32_0 : i32, i32
  }
  func.func @transform_13(%arg0: i32) -> (i32, i32) {
    %c0_i32 = arith.constant 0 : i32
    %c0_i32_0 = arith.constant 0 : i32
    %c0_i32_1 = arith.constant 0 : i32
    return %c0_i32, %c0_i32_0 : i32, i32
  }
  func.func @transform_14(%arg0: i32) -> (i32, i32) {
    %c0_i32 = arith.constant 0 : i32
    %c0_i32_0 = arith.constant 0 : i32
    %c0_i32_1 = arith.constant 0 : i32
    return %c0_i32, %c0_i32_0 : i32, i32
  }
  func.func @transform_15(%arg0: i32) -> (i32, i32) {
    %c0_i32 = arith.constant 0 : i32
    %c0_i32_0 = arith.constant 0 : i32
    %c0_i32_1 = arith.constant 0 : i32
    return %c0_i32, %c0_i32_0 : i32, i32
  }
  func.func @transform_16(%arg0: i32) -> (i32, i32) {
    %c0_i32 = arith.constant 0 : i32
    %c0_i32_0 = arith.constant 0 : i32
    %c0_i32_1 = arith.constant 0 : i32
    return %c0_i32, %c0_i32_0 : i32, i32
  }
  func.func @transform_17(%arg0: i32) -> (i32, i32) {
    %c0_i32 = arith.constant 0 : i32
    %c0_i32_0 = arith.constant 0 : i32
    %c0_i32_1 = arith.constant 0 : i32
    return %c0_i32, %c0_i32_0 : i32, i32
  }
  func.func @transform_18(%arg0: i32) -> (i32, i32) {
    %c0_i32 = arith.constant 0 : i32
    %c0_i32_0 = arith.constant 0 : i32
    %c0_i32_1 = arith.constant 0 : i32
    return %c0_i32, %c0_i32_0 : i32, i32
  }
  func.func @transform_19(%arg0: i32) -> (i32, i32) {
    %c0_i32 = arith.constant 0 : i32
    %c0_i32_0 = arith.constant 0 : i32
    %c0_i32_1 = arith.constant 0 : i32
    return %c0_i32, %c0_i32_0 : i32, i32
  }
  func.func @transform_20(%arg0: i32) -> (i32, i32) {
    %c0_i32 = arith.constant 0 : i32
    %c0_i32_0 = arith.constant 0 : i32
    %c0_i32_1 = arith.constant 0 : i32
    return %c0_i32, %c0_i32_0 : i32, i32
  }
  func.func @transform_21(%arg0: i32) -> (i32, i32) {
    %c0_i32 = arith.constant 0 : i32
    %c0_i32_0 = arith.constant 0 : i32
    %c0_i32_1 = arith.constant 0 : i32
    return %c0_i32, %c0_i32_0 : i32, i32
  }
  func.func @transform_22(%arg0: i32) -> (i32, i32) {
    %c0_i32 = arith.constant 0 : i32
    %c0_i32_0 = arith.constant 0 : i32
    %c0_i32_1 = arith.constant 0 : i32
    return %c0_i32, %c0_i32_0 : i32, i32
  }
  func.func @transform_23(%arg0: i32) -> (i32, i32) {
    %c0_i32 = arith.constant 0 : i32
    %c0_i32_0 = arith.constant 0 : i32
    %c0_i32_1 = arith.constant 0 : i32
    return %c0_i32, %c0_i32_0 : i32, i32
  }
}

</mosaic_0001>

<llo_original>
// kernel: gnn_forward.1
$region0: #{gnn_forward.1}
  #allocation0 [shape = 'u32[]', space=smem, size = 0x4, offset = 0x4, fixed_abs, tag = 'smem constant byte address 0x4 - core index']
  #allocation1 [shape = 'u32[72,128]{1,0:T(1,128)}', space=vmem, size = 0x9000, scoped, tag = 'internal scratch']
  #allocation2 [shape = 'f32[1,1]{1,0:T(1,128)S(6)}', space=smem, size = 0x200, scoped, tag = 'scoped memory for gnn_forward.1']
  %s0 = inlined_call_operand.vmem [shape: f32[16,32], index: 0, kind: input, shape index: {}]
  %s1 = inlined_call_operand.vmem [shape: bf16[16,16], index: 1, kind: input, shape index: {}]
  %s2 = inlined_call_operand.vmem [shape: f32[16,1], index: 2, kind: input, shape index: {}]
  %s3 = inlined_call_operand.vmem [shape: bf16[32,64], index: 3, kind: input, shape index: {}]
  %s4 = inlined_call_operand.vmem [shape: f32[1,32], index: 4, kind: input, shape index: {}]
  %s5 = inlined_call_operand.vmem [shape: bf16[32,128], index: 5, kind: input, shape index: {}]
  %s6 = inlined_call_operand.vmem [shape: f32[4,128], index: 6, kind: input, shape index: {}]
  %s7 = inlined_call_operand.vmem [shape: f32[128,4], index: 7, kind: input, shape index: {}]
  %s8 = inlined_call_operand.vmem [shape: f32[1,128], index: 8, kind: input, shape index: {}]
  %s9 = inlined_call_operand.vmem [shape: bf16[32,64], index: 9, kind: input, shape index: {}]
  %s10 = inlined_call_operand.vmem [shape: f32[1,32], index: 10, kind: input, shape index: {}]
  %s11 = inlined_call_operand.vmem [shape: bf16[32,128], index: 11, kind: input, shape index: {}]
  %s12 = inlined_call_operand.vmem [shape: f32[4,128], index: 12, kind: input, shape index: {}]
  %s13 = inlined_call_operand.vmem [shape: f32[128,4], index: 13, kind: input, shape index: {}]
  %s14 = inlined_call_operand.vmem [shape: f32[1,128], index: 14, kind: input, shape index: {}]
  %s15 = inlined_call_operand.vmem [shape: bf16[32,64], index: 15, kind: input, shape index: {}]
  %s16 = inlined_call_operand.vmem [shape: f32[1,32], index: 16, kind: input, shape index: {}]
  %s17 = inlined_call_operand.vmem [shape: bf16[32,128], index: 17, kind: input, shape index: {}]
  %s18 = inlined_call_operand.vmem [shape: f32[4,128], index: 18, kind: input, shape index: {}]
  %s19 = inlined_call_operand.vmem [shape: f32[128,4], index: 19, kind: input, shape index: {}]
  %s20 = inlined_call_operand.vmem [shape: f32[1,128], index: 20, kind: input, shape index: {}]
  %s21 = inlined_call_operand.vmem [shape: f32[1,32], index: 21, kind: input, shape index: {}]
  %s22 = inlined_call_operand.<no memory space> [shape: f32[1,1], index: 22, kind: input, shape index: {}]
  %s23 = inlined_call_operand.hbm [shape: f32[16,32], index: 23, kind: output, shape index: {}]
  %s24 = sld [smem:[#allocation0]]
  $region102: #{gnn_forward.1} parent=0
    _
  %s26 = ssub.s32 1, %s24
  %s27 = scalar_select 0, %s26, %s24
  %28 = sst [smem:[#allocation2]] %s22
  $region1: #{gnn_forward.1} parent=0
    #allocation3 [shape = 'u8[8192]{0}', space=vmem, size = 0x2000, scoped, tag = 'output window, operand 0, single buffered']
    #allocation4 [shape = 's32[1]{0}', space=sflag, size = 0x4, scoped, tag = 'scoped memory for gnn_forward.1']
    %29 = vsyncpa [#allocation4], 0
    // Predicated region
    $region2: #{gnn_forward.1} parent=1 // pred_check
      _
    $region3: #{gnn_forward.1} parent=1 // pred_check_branch
      %31 = sbr.rel (0) target = $region5
    $region4: #{gnn_forward.1} parent=1 // pred_region
      _
    $region5: #{gnn_forward.1} parent=1 // pred_fallthru
      _
    // Predicated region
    $region6: #{gnn_forward.1} parent=1 // pred_check
      _
    $region7: #{gnn_forward.1} parent=1 // pred_check_branch
      %33 = sbr.rel (0) target = $region9
    $region8: #{gnn_forward.1} parent=1 // pred_region
      _
    $region9: #{gnn_forward.1} parent=1 // pred_fallthru
      _
    // Predicated region
    $region10: #{gnn_forward.1} parent=1 // pred_check
      _
    $region11: #{gnn_forward.1} parent=1 // pred_check_branch
      %35 = sbr.rel (0) target = $region13
    $region12: #{gnn_forward.1} parent=1 // pred_region
      _
    $region13: #{gnn_forward.1} parent=1 // pred_fallthru
      _
    // Predicated region
    $region14: #{gnn_forward.1} parent=1 // pred_check
      _
    $region15: #{gnn_forward.1} parent=1 // pred_check_branch
      %37 = sbr.rel (0) target = $region17
    $region16: #{gnn_forward.1} parent=1 // pred_region
      _
    $region17: #{gnn_forward.1} parent=1 // pred_fallthru
      _
    // Predicated region
    $region18: #{gnn_forward.1} parent=1 // pred_check
      _
    $region19: #{gnn_forward.1} parent=1 // pred_check_branch
      %39 = sbr.rel (0) target = $region21
    $region20: #{gnn_forward.1} parent=1 // pred_region
      _
    $region21: #{gnn_forward.1} parent=1 // pred_fallthru
      _
    // Predicated region
    $region22: #{gnn_forward.1} parent=1 // pred_check
      _
    $region23: #{gnn_forward.1} parent=1 // pred_check_branch
      %41 = sbr.rel (0) target = $region25
    $region24: #{gnn_forward.1} parent=1 // pred_region
      _
    $region25: #{gnn_forward.1} parent=1 // pred_fallthru
      _
    // Predicated region
    $region26: #{gnn_forward.1} parent=1 // pred_check
      _
    $region27: #{gnn_forward.1} parent=1 // pred_check_branch
      %43 = sbr.rel (0) target = $region29
    $region28: #{gnn_forward.1} parent=1 // pred_region
      _
    $region29: #{gnn_forward.1} parent=1 // pred_fallthru
      _
    // Predicated region
    $region30: #{gnn_forward.1} parent=1 // pred_check
      _
    $region31: #{gnn_forward.1} parent=1 // pred_check_branch
      %45 = sbr.rel (0) target = $region33
    $region32: #{gnn_forward.1} parent=1 // pred_region
      _
    $region33: #{gnn_forward.1} parent=1 // pred_fallthru
      _
    // Predicated region
    $region34: #{gnn_forward.1} parent=1 // pred_check
      _
    $region35: #{gnn_forward.1} parent=1 // pred_check_branch
      %47 = sbr.rel (0) target = $region37
    $region36: #{gnn_forward.1} parent=1 // pred_region
      _
    $region37: #{gnn_forward.1} parent=1 // pred_fallthru
      _
    // Predicated region
    $region38: #{gnn_forward.1} parent=1 // pred_check
      _
    $region39: #{gnn_forward.1} parent=1 // pred_check_branch
      %49 = sbr.rel (0) target = $region41
    $region40: #{gnn_forward.1} parent=1 // pred_region
      _
    $region41: #{gnn_forward.1} parent=1 // pred_fallthru
      _
    // Predicated region
    $region42: #{gnn_forward.1} parent=1 // pred_check
      _
    $region43: #{gnn_forward.1} parent=1 // pred_check_branch
      %51 = sbr.rel (0) target = $region45
    $region44: #{gnn_forward.1} parent=1 // pred_region
      _
    $region45: #{gnn_forward.1} parent=1 // pred_fallthru
      _
    // Predicated region
    $region46: #{gnn_forward.1} parent=1 // pred_check
      _
    $region47: #{gnn_forward.1} parent=1 // pred_check_branch
      %53 = sbr.rel (0) target = $region49
    $region48: #{gnn_forward.1} parent=1 // pred_region
      _
    $region49: #{gnn_forward.1} parent=1 // pred_fallthru
      _
    // Predicated region
    $region50: #{gnn_forward.1} parent=1 // pred_check
      _
    $region51: #{gnn_forward.1} parent=1 // pred_check_branch
      %55 = sbr.rel (0) target = $region53
    $region52: #{gnn_forward.1} parent=1 // pred_region
      _
    $region53: #{gnn_forward.1} parent=1 // pred_fallthru
      _
    // Predicated region
    $region54: #{gnn_forward.1} parent=1 // pred_check
      _
    $region55: #{gnn_forward.1} parent=1 // pred_check_branch
      %57 = sbr.rel (0) target = $region57
    $region56: #{gnn_forward.1} parent=1 // pred_region
      _
    $region57: #{gnn_forward.1} parent=1 // pred_fallthru
      _
    // Predicated region
    $region58: #{gnn_forward.1} parent=1 // pred_check
      _
    $region59: #{gnn_forward.1} parent=1 // pred_check_branch
      %59 = sbr.rel (0) target = $region61
    $region60: #{gnn_forward.1} parent=1 // pred_region
      _
    $region61: #{gnn_forward.1} parent=1 // pred_fallthru
      _
    // Predicated region
    $region62: #{gnn_forward.1} parent=1 // pred_check
      _
    $region63: #{gnn_forward.1} parent=1 // pred_check_branch
      %61 = sbr.rel (0) target = $region65
    $region64: #{gnn_forward.1} parent=1 // pred_region
      _
    $region65: #{gnn_forward.1} parent=1 // pred_fallthru
      _
    // Predicated region
    $region66: #{gnn_forward.1} parent=1 // pred_check
      _
    $region67: #{gnn_forward.1} parent=1 // pred_check_branch
      %63 = sbr.rel (0) target = $region69
    $region68: #{gnn_forward.1} parent=1 // pred_region
      _
    $region69: #{gnn_forward.1} parent=1 // pred_fallthru
      _
    // Predicated region
    $region70: #{gnn_forward.1} parent=1 // pred_check
      _
    $region71: #{gnn_forward.1} parent=1 // pred_check_branch
      %65 = sbr.rel (0) target = $region73
    $region72: #{gnn_forward.1} parent=1 // pred_region
      _
    $region73: #{gnn_forward.1} parent=1 // pred_fallthru
      _
    // Predicated region
    $region74: #{gnn_forward.1} parent=1 // pred_check
      _
    $region75: #{gnn_forward.1} parent=1 // pred_check_branch
      %67 = sbr.rel (0) target = $region77
    $region76: #{gnn_forward.1} parent=1 // pred_region
      _
    $region77: #{gnn_forward.1} parent=1 // pred_fallthru
      _
    // Predicated region
    $region78: #{gnn_forward.1} parent=1 // pred_check
      _
    $region79: #{gnn_forward.1} parent=1 // pred_check_branch
      %69 = sbr.rel (0) target = $region81
    $region80: #{gnn_forward.1} parent=1 // pred_region
      _
    $region81: #{gnn_forward.1} parent=1 // pred_fallthru
      _
    // Predicated region
    $region82: #{gnn_forward.1} parent=1 // pred_check
      _
    $region83: #{gnn_forward.1} parent=1 // pred_check_branch
      %71 = sbr.rel (0) target = $region85
    $region84: #{gnn_forward.1} parent=1 // pred_region
      _
    $region85: #{gnn_forward.1} parent=1 // pred_fallthru
      _
    // Predicated region
    $region86: #{gnn_forward.1} parent=1 // pred_check
      _
    $region87: #{gnn_forward.1} parent=1 // pred_check_branch
      %73 = sbr.rel (0) target = $region89
    $region88: #{gnn_forward.1} parent=1 // pred_region
      _
    $region89: #{gnn_forward.1} parent=1 // pred_fallthru
      _
    // Predicated region
    $region90: #{gnn_forward.1} parent=1 // pred_check
      _
    $region91: #{gnn_forward.1} parent=1 // pred_check_branch
      %75 = sbr.rel (0) target = $region93
    $region92: #{gnn_forward.1} parent=1 // pred_region
      _
    $region93: #{gnn_forward.1} parent=1 // pred_fallthru
      _
    %v77 = vld [vmem:[%s0] sm:$0xff]
    %v78 = vld [vmem:[%s0 + $0x8] sm:$0xff]
    %v79 = vld [vmem:[%s1] sm:$0xf]
    %v80 = vld [vmem:[%s1 + $0x4] sm:$0xf]
    %v81 = vld [vmem:[%s2] sm:$0xff]
    %v82 = vld [vmem:[%s2 + $0x8] sm:$0xff]
    %vm83 = vcmp.gt.f32.partialorder %v81, 0.0
    %vm84 = vcmp.gt.f32.partialorder %v82, 0.0
    %v85 = vunpack.c.l.bf16 %v79
    %v86 = vunpack.c.l.bf16 %v80
    %v87 = vsub.f32 %v85, 1.0
    %v88 = vsub.f32 %v86, 1.0
    %v89 = vmul.f32 %v87, 1e+30
    %v90 = vmul.f32 %v88, 1e+30
    %v91 = vld [vmem:[%s3] sm:$0xf]
    %v92 = vld [vmem:[%s3 + $0x4] sm:$0xf]
    %v93 = vld [vmem:[%s3 + $0x8] sm:$0xf]
    %v94 = vld [vmem:[%s3 + $0xc] sm:$0xf]
    %v95 = vld [vmem:[%s4] sm:$0x1]
    %v96 = vld [vmem:[%s5] sm:$0xf]
    %v97 = vld [vmem:[%s5 + $0x4] sm:$0xf]
    %v98 = vld [vmem:[%s5 + $0x8] sm:$0xf]
    %v99 = vld [vmem:[%s5 + $0xc] sm:$0xf]
    %v100 = vld [vmem:[%s6] sm:$0xf]
    %v101 = vld [vmem:[%s7] sm:$0xff]
    %v102 = vld [vmem:[%s7 + $0x8] sm:$0xff]
    %v103 = vld [vmem:[%s7 + $0x10] sm:$0xff]
    %v104 = vld [vmem:[%s7 + $0x18] sm:$0xff]
    %v105 = vld [vmem:[%s7 + $0x20] sm:$0xff]
    %v106 = vld [vmem:[%s7 + $0x28] sm:$0xff]
    %v107 = vld [vmem:[%s7 + $0x30] sm:$0xff]
    %v108 = vld [vmem:[%s7 + $0x38] sm:$0xff]
    %v109 = vld [vmem:[%s7 + $0x40] sm:$0xff]
    %v110 = vld [vmem:[%s7 + $0x48] sm:$0xff]
    %v111 = vld [vmem:[%s7 + $0x50] sm:$0xff]
    %v112 = vld [vmem:[%s7 + $0x58] sm:$0xff]
    %v113 = vld [vmem:[%s7 + $0x60] sm:$0xff]
    %v114 = vld [vmem:[%s7 + $0x68] sm:$0xff]
    %v115 = vld [vmem:[%s7 + $0x70] sm:$0xff]
    %v116 = vld [vmem:[%s7 + $0x78] sm:$0xff]
    %v117 = vld [vmem:[%s8] sm:$0x1]
    %v118 = vpack.c.bf16 %v78, %v77
    %v123 = vunpack.c.l.b16 %v91
    %v124 = vunpack.c.l.b16 %v92
    %v125 = vunpack.c.l.b16 %v93
    %v126 = vunpack.c.l.b16 %v94
    %v127 = vpack.c.b16 %v124, %v123
    %v128 = vpack.c.b16 %v126, %v125
    %vm131 = vcmask 261120
    %v133 = vsel %vm131, %v118, 0
    %135 = vmatpush.bf16.msra.mxu0 0
    %136 = vmatpush.bf16.msra.mxu0 0
    %137 = vmatpush.bf16.msra.mxu0 0
    %138 = vmatpush.bf16.msra.mxu0 0
    %139 = vmatpush.bf16.msra.mxu0 0
    %140 = vmatpush.bf16.msra.mxu0 0
    %141 = vmatpush.bf16.msra.mxu0 %v128
    %142 = vmatpush.bf16.msra.mxu0 %v127
    %143 = vmatmul.bf16.gmra.mxu0 %v133
    %v144 = vpop.f32.mrf.mxu0
    %v145 = vadd.f32 0.0, %v144
    %v146 = vpop.f32.mrf.mxu0
    %v147 = vadd.f32 0.0, %v146
    %148 = vdwg.mxu0
    %v149 = vpack.c.bf16 %v147, %v145
    %v152 = vunpack.c.l.b16 %v79
    %v153 = vunpack.c.l.b16 %v80
    %v154 = vpack.c.b16 %v153, %v152
    %vm155 = vcmask 130048
    %v157 = vsel %vm155, %v154, 0
    %159 = vmatpush.bf16.msra.mxu0 0
    %160 = vmatpush.bf16.msra.mxu0 0
    %161 = vmatpush.bf16.msra.mxu0 0
    %162 = vmatpush.bf16.msra.mxu0 0
    %163 = vmatpush.bf16.msra.mxu0 0
    %164 = vmatpush.bf16.msra.mxu0 0
    %165 = vmatpush.bf16.msra.mxu0 0
    %166 = vmatpush.bf16.msra.mxu0 %v149
    %167 = vmatmul.bf16.gmra.mxu0 %v157
    %v168 = vpop.f32.mrf.mxu0
    %v169 = vadd.f32 0.0, %v168
    %v170 = vpop.f32.mrf.mxu0
    %v171 = vadd.f32 0.0, %v170
    %172 = vdwg.mxu0
    %174 = vset.pattern.permute.xlu0 0
    %175 = vperm.xlu0 %174, %v81
    %v176 = vpop.permute.xlu0 %175
    %179 = vset.pattern.permute.xlu0 0
    %180 = vperm.xlu0 %179, %v82
    %v181 = vpop.permute.xlu0 %180
    %v183 = vmul.f32 %v169, %v176
    %v184 = vmul.f32 %v171, %v181
    %187 = vrot.lane.b32.xlu0 %v145, 96
    %v188 = vpop.permute.xlu0 %187
    %189 = vrot.lane.b32.xlu0 %v147, 96
    %v190 = vpop.permute.xlu0 %189
    %v193 = vadd.f32 %v183, %v188
    %v194 = vadd.f32 %v184, %v190
    %v196 = vperm.slane %v95, 0
    %v198 = vadd.f32 %v193, %v196
    %v199 = vadd.f32 %v194, %v196
    %v200 = vmax.f32 %v198, 0.0
    %v201 = vmax.f32 %v199, 0.0
    %v202 = vpack.c.bf16 %v201, %v200
    %v207 = vunpack.c.l.b16 %v96
    %v208 = vunpack.c.l.b16 %v97
    %v209 = vunpack.c.l.b16 %v98
    %v210 = vunpack.c.l.b16 %v99
    %v211 = vpack.c.b16 %v208, %v207
    %v212 = vpack.c.b16 %v210, %v209
    %v216 = vsel %vm131, %v202, 0
    %218 = vmatpush.bf16.msra.mxu0 0
    %219 = vmatpush.bf16.msra.mxu0 0
    %220 = vmatpush.bf16.msra.mxu0 0
    %221 = vmatpush.bf16.msra.mxu0 0
    %222 = vmatpush.bf16.msra.mxu0 0
    %223 = vmatpush.bf16.msra.mxu0 0
    %224 = vmatpush.bf16.msra.mxu0 %v212
    %225 = vmatpush.bf16.msra.mxu0 %v211
    %226 = vmatmul.bf16.gmra.mxu0 %v216
    %v227 = vpop.f32.mrf.mxu0
    %v228 = vadd.f32 0.0, %v227
    %v229 = vpop.f32.mrf.mxu0
    %v230 = vadd.f32 0.0, %v229
    %231 = vdwg.mxu0
    %232 = vmatpush.msra.mxu0 %v116
    %233 = vmatpush.msra.mxu0 %v115
    %234 = vmatpush.msra.mxu0 %v114
    %235 = vmatpush.msra.mxu0 %v113
    %236 = vmatpush.msra.mxu0 %v112
    %237 = vmatpush.msra.mxu0 %v111
    %238 = vmatpush.msra.mxu0 %v110
    %239 = vmatpush.msra.mxu0 %v109
    %240 = vmatpush.msra.mxu0 %v108
    %241 = vmatpush.msra.mxu0 %v107
    %242 = vmatpush.msra.mxu0 %v106
    %243 = vmatpush.msra.mxu0 %v105
    %244 = vmatpush.msra.mxu0 %v104
    %245 = vmatpush.msra.mxu0 %v103
    %246 = vmatpush.msra.mxu0 %v102
    %247 = vmatpush.msra.mxu0 %v101
    %248 = vmatmul.f32.gmra.mxu0 %v228
    %v249 = vpop.f32.mrf.mxu0
    %v250 = vadd.f32 0.0, %v249
    %251 = vmatmul.f32.gmra.mxu0 %v230
    %v252 = vpop.f32.mrf.mxu0
    %v253 = vadd.f32 0.0, %v252
    %254 = vdwg.mxu0
    %255 = vmatpush.xpose.msra.mxu0 0.0
    %256 = vmatpush.xpose.msra.mxu0 0.0
    %257 = vmatpush.xpose.msra.mxu0 0.0
    %258 = vmatpush.xpose.msra.mxu0 0.0
    %259 = vmatpush.xpose.msra.mxu0 0.0
    %260 = vmatpush.xpose.msra.mxu0 0.0
    %261 = vmatpush.xpose.msra.mxu0 0.0
    %262 = vmatpush.xpose.msra.mxu0 0.0
    %263 = vmatpush.xpose.msra.mxu0 0.0
    %264 = vmatpush.xpose.msra.mxu0 0.0
    %265 = vmatpush.xpose.msra.mxu0 0.0
    %266 = vmatpush.xpose.msra.mxu0 0.0
    %267 = vmatpush.xpose.msra.mxu0 0.0
    %268 = vmatpush.xpose.msra.mxu0 0.0
    %269 = vmatpush.xpose.msra.mxu0 %v230
    %270 = vmatpush.xpose.msra.mxu0 %v228
    %271 = vmatmul.f32.gmra.mxu0 %v100
    %v272 = vpop.f32.mrf.mxu0
    %v273 = vadd.f32 0.0, %v272
    %274 = vdwg.mxu0
    %276 = vset.pattern.permute.xlu0 0
    %277 = vperm.xlu0 %276, %v250
    %v278 = vpop.permute.xlu0 %277
    %281 = vset.pattern.permute.xlu0 0
    %282 = vperm.xlu0 %281, %v253
    %v283 = vpop.permute.xlu0 %282
    %v285 = vperm.slane %v273, 0
    %v286 = vadd.f32 %v278, %v285
    %v287 = vadd.f32 %v283, %v285
    %v288 = vmul.f32 %v286, 0.2
    %v289 = vmul.f32 %v287, 0.2
    %v290 = vmax.f32 %v286, %v288
    %v291 = vmax.f32 %v287, %v289
    %v292 = vadd.f32 %v290, %v89
    %v293 = vadd.f32 %v291, %v90
    %v294 = vsel %vm155, %v292, -inf
    %295 = vmax.xlane.f32.xlu0 %v294
    %v296 = vpop.xlane.xlu0 %295
    %v297 = vsel %vm155, %v293, -inf
    %298 = vmax.xlane.f32.xlu0 %v297
    %v299 = vpop.xlane.xlu0 %298
    %v300 = vsub.f32 %v292, %v296
    %v301 = vsub.f32 %v293, %v299
    %v302 = vmul.f32 %v300, 1.442695
    %v303 = vpow.pop %v302
    %v304 = vmul.f32 %v301, 1.442695
    %v305 = vpow.pop %v304
    %v306 = vsel %vm155, %v303, 0.0
    %307 = vadd.xlane.f32.xlu0 %v306
    %v308 = vpop.xlane.xlu0 %307
    %v309 = vsel %vm155, %v305, 0.0
    %310 = vadd.xlane.f32.xlu0 %v309
    %v311 = vpop.xlane.xlu0 %310
    %v312 = vrcp.pop %v308
    %v313 = vrcp.pop %v311
    %v314 = vmul.f32 %v303, %v312
    %v315 = vmul.f32 %v305, %v313
    %v316 = vpack.c.bf16 %v315, %v314
    %v317 = vpack.c.bf16 %v230, %v228
    %v319 = vsel %vm155, %v316, 0
    %321 = vmatpush.bf16.msra.mxu0 0
    %322 = vmatpush.bf16.msra.mxu0 0
    %323 = vmatpush.bf16.msra.mxu0 0
    %324 = vmatpush.bf16.msra.mxu0 0
    %325 = vmatpush.bf16.msra.mxu0 0
    %326 = vmatpush.bf16.msra.mxu0 0
    %327 = vmatpush.bf16.msra.mxu0 0
    %328 = vmatpush.bf16.msra.mxu0 %v317
    %329 = vmatmul.bf16.gmra.mxu0 %v319
    %v330 = vpop.f32.mrf.mxu0
    %v331 = vadd.f32 0.0, %v330
    %v332 = vpop.f32.mrf.mxu0
    %v333 = vadd.f32 0.0, %v332
    %334 = vdwg.mxu0
    %v335 = vsel %vm83, 1, 0
    %v336 = vsel %vm84, 1, 0
    %337 = vset.pattern.permute.xlu0 0
    %338 = vperm.xlu0 %337, %v335
    %v339 = vpop.permute.xlu0 %338
    %340 = vset.pattern.permute.xlu0 0
    %341 = vperm.xlu0 %340, %v336
    %v342 = vpop.permute.xlu0 %341
    %vm343 = vcmp.eq.s32.totalorder %v339, 1
    %vm344 = vcmp.eq.s32.totalorder %v342, 1
    %v345 = vsel %vm343, %v331, 0.0
    %v346 = vsel %vm344, %v333, 0.0
    %v348 = vperm.slane %v117, 0
    %v350 = vadd.f32 %v345, %v348
    %v351 = vadd.f32 %v346, %v348
    %v352 = vmax.f32 %v350, 0.0
    %v353 = vmax.f32 %v351, 0.0
    %v354 = vadd.f32 %v352, 0.0
    %v355 = vadd.f32 %v353, 0.0
    %356 = vset.pattern.permute.xlu0 1
    %357 = vperm.xlu0 %356, %v250
    %v358 = vpop.permute.xlu0 %357
    %360 = vset.pattern.permute.xlu0 1
    %361 = vperm.xlu0 %360, %v253
    %v362 = vpop.permute.xlu0 %361
    %v364 = vperm.slane %v273, 1
    %v365 = vadd.f32 %v358, %v364
    %v366 = vadd.f32 %v362, %v364
    %v367 = vmul.f32 %v365, 0.2
    %v368 = vmul.f32 %v366, 0.2
    %v369 = vmax.f32 %v365, %v367
    %v370 = vmax.f32 %v366, %v368
    %v371 = vadd.f32 %v369, %v89
    %v372 = vadd.f32 %v370, %v90
    %v373 = vsel %vm155, %v371, -inf
    %374 = vmax.xlane.f32.xlu0 %v373
    %v375 = vpop.xlane.xlu0 %374
    %v376 = vsel %vm155, %v372, -inf
    %377 = vmax.xlane.f32.xlu0 %v376
    %v378 = vpop.xlane.xlu0 %377
    %v379 = vsub.f32 %v371, %v375
    %v380 = vsub.f32 %v372, %v378
    %v381 = vmul.f32 %v379, 1.442695
    %v382 = vpow.pop %v381
    %v383 = vmul.f32 %v380, 1.442695
    %v384 = vpow.pop %v383
    %v385 = vsel %vm155, %v382, 0.0
    %386 = vadd.xlane.f32.xlu0 %v385
    %v387 = vpop.xlane.xlu0 %386
    %v388 = vsel %vm155, %v384, 0.0
    %389 = vadd.xlane.f32.xlu0 %v388
    %v390 = vpop.xlane.xlu0 %389
    %v391 = vrcp.pop %v387
    %v392 = vrcp.pop %v390
    %v393 = vmul.f32 %v382, %v391
    %v394 = vmul.f32 %v384, %v392
    %v395 = vpack.c.bf16 %v394, %v393
    %397 = vrot.lane.b32.xlu0 %v317, 96
    %v398 = vpop.permute.xlu0 %397
    %v401 = vsel %vm155, %v395, 0
    %403 = vmatpush.bf16.msra.mxu0 0
    %404 = vmatpush.bf16.msra.mxu0 0
    %405 = vmatpush.bf16.msra.mxu0 0
    %406 = vmatpush.bf16.msra.mxu0 0
    %407 = vmatpush.bf16.msra.mxu0 0
    %408 = vmatpush.bf16.msra.mxu0 0
    %409 = vmatpush.bf16.msra.mxu0 0
    %410 = vmatpush.bf16.msra.mxu0 %v398
    %411 = vmatmul.bf16.gmra.mxu0 %v401
    %v412 = vpop.f32.mrf.mxu0
    %v413 = vadd.f32 0.0, %v412
    %v414 = vpop.f32.mrf.mxu0
    %v415 = vadd.f32 0.0, %v414
    %416 = vdwg.mxu0
    %v417 = vsel %vm343, %v413, 0.0
    %v418 = vsel %vm344, %v415, 0.0
    %419 = vrot.lane.b32.xlu0 %v348, 96
    %v420 = vpop.permute.xlu0 %419
    %v422 = vadd.f32 %v417, %v420
    %v423 = vadd.f32 %v418, %v420
    %v424 = vmax.f32 %v422, 0.0
    %v425 = vmax.f32 %v423, 0.0
    %v426 = vadd.f32 %v354, %v424
    %v427 = vadd.f32 %v355, %v425
    %428 = vset.pattern.permute.xlu0 2
    %429 = vperm.xlu0 %428, %v250
    %v430 = vpop.permute.xlu0 %429
    %432 = vset.pattern.permute.xlu0 2
    %433 = vperm.xlu0 %432, %v253
    %v434 = vpop.permute.xlu0 %433
    %v436 = vperm.slane %v273, 2
    %v437 = vadd.f32 %v430, %v436
    %v438 = vadd.f32 %v434, %v436
    %v439 = vmul.f32 %v437, 0.2
    %v440 = vmul.f32 %v438, 0.2
    %v441 = vmax.f32 %v437, %v439
    %v442 = vmax.f32 %v438, %v440
    %v443 = vadd.f32 %v441, %v89
    %v444 = vadd.f32 %v442, %v90
    %v445 = vsel %vm155, %v443, -inf
    %446 = vmax.xlane.f32.xlu0 %v445
    %v447 = vpop.xlane.xlu0 %446
    %v448 = vsel %vm155, %v444, -inf
    %449 = vmax.xlane.f32.xlu0 %v448
    %v450 = vpop.xlane.xlu0 %449
    %v451 = vsub.f32 %v443, %v447
    %v452 = vsub.f32 %v444, %v450
    %v453 = vmul.f32 %v451, 1.442695
    %v454 = vpow.pop %v453
    %v455 = vmul.f32 %v452, 1.442695
    %v456 = vpow.pop %v455
    %v457 = vsel %vm155, %v454, 0.0
    %458 = vadd.xlane.f32.xlu0 %v457
    %v459 = vpop.xlane.xlu0 %458
    %v460 = vsel %vm155, %v456, 0.0
    %461 = vadd.xlane.f32.xlu0 %v460
    %v462 = vpop.xlane.xlu0 %461
    %v463 = vrcp.pop %v459
    %v464 = vrcp.pop %v462
    %v465 = vmul.f32 %v454, %v463
    %v466 = vmul.f32 %v456, %v464
    %v467 = vpack.c.bf16 %v466, %v465
    %468 = vrot.lane.b32.xlu0 %v317, 64
    %v469 = vpop.permute.xlu0 %468
    %v472 = vsel %vm155, %v467, 0
    %474 = vmatpush.bf16.msra.mxu0 0
    %475 = vmatpush.bf16.msra.mxu0 0
    %476 = vmatpush.bf16.msra.mxu0 0
    %477 = vmatpush.bf16.msra.mxu0 0
    %478 = vmatpush.bf16.msra.mxu0 0
    %479 = vmatpush.bf16.msra.mxu0 0
    %480 = vmatpush.bf16.msra.mxu0 0
    %481 = vmatpush.bf16.msra.mxu0 %v469
    %482 = vmatmul.bf16.gmra.mxu0 %v472
    %v483 = vpop.f32.mrf.mxu0
    %v484 = vadd.f32 0.0, %v483
    %v485 = vpop.f32.mrf.mxu0
    %v486 = vadd.f32 0.0, %v485
    %487 = vdwg.mxu0
    %v488 = vsel %vm343, %v484, 0.0
    %v489 = vsel %vm344, %v486, 0.0
    %490 = vrot.lane.b32.xlu0 %v348, 64
    %v491 = vpop.permute.xlu0 %490
    %v493 = vadd.f32 %v488, %v491
    %v494 = vadd.f32 %v489, %v491
    %v495 = vmax.f32 %v493, 0.0
    %v496 = vmax.f32 %v494, 0.0
    %v497 = vadd.f32 %v426, %v495
    %v498 = vadd.f32 %v427, %v496
    %499 = vset.pattern.permute.xlu0 3
    %500 = vperm.xlu0 %499, %v250
    %v501 = vpop.permute.xlu0 %500
    %503 = vset.pattern.permute.xlu0 3
    %504 = vperm.xlu0 %503, %v253
    %v505 = vpop.permute.xlu0 %504
    %v507 = vperm.slane %v273, 3
    %v508 = vadd.f32 %v501, %v507
    %v509 = vadd.f32 %v505, %v507
    %v510 = vmul.f32 %v508, 0.2
    %v511 = vmul.f32 %v509, 0.2
    %v512 = vmax.f32 %v508, %v510
    %v513 = vmax.f32 %v509, %v511
    %v514 = vadd.f32 %v512, %v89
    %v515 = vadd.f32 %v513, %v90
    %v516 = vsel %vm155, %v514, -inf
    %517 = vmax.xlane.f32.xlu0 %v516
    %v518 = vpop.xlane.xlu0 %517
    %v519 = vsel %vm155, %v515, -inf
    %520 = vmax.xlane.f32.xlu0 %v519
    %v521 = vpop.xlane.xlu0 %520
    %v522 = vsub.f32 %v514, %v518
    %v523 = vsub.f32 %v515, %v521
    %v524 = vmul.f32 %v522, 1.442695
    %v525 = vpow.pop %v524
    %v526 = vmul.f32 %v523, 1.442695
    %v527 = vpow.pop %v526
    %v528 = vsel %vm155, %v525, 0.0
    %529 = vadd.xlane.f32.xlu0 %v528
    %v530 = vpop.xlane.xlu0 %529
    %v531 = vsel %vm155, %v527, 0.0
    %532 = vadd.xlane.f32.xlu0 %v531
    %v533 = vpop.xlane.xlu0 %532
    %v534 = vrcp.pop %v530
    %v535 = vrcp.pop %v533
    %v536 = vmul.f32 %v525, %v534
    %v537 = vmul.f32 %v527, %v535
    %v538 = vpack.c.bf16 %v537, %v536
    %539 = vrot.lane.b32.xlu0 %v317, 32
    %v540 = vpop.permute.xlu0 %539
    %v543 = vsel %vm155, %v538, 0
    %545 = vmatpush.bf16.msra.mxu0 0
    %546 = vmatpush.bf16.msra.mxu0 0
    %547 = vmatpush.bf16.msra.mxu0 0
    %548 = vmatpush.bf16.msra.mxu0 0
    %549 = vmatpush.bf16.msra.mxu0 0
    %550 = vmatpush.bf16.msra.mxu0 0
    %551 = vmatpush.bf16.msra.mxu0 0
    %552 = vmatpush.bf16.msra.mxu0 %v540
    %553 = vmatmul.bf16.gmra.mxu0 %v543
    %v554 = vpop.f32.mrf.mxu0
    %v555 = vadd.f32 0.0, %v554
    %v556 = vpop.f32.mrf.mxu0
    %v557 = vadd.f32 0.0, %v556
    %558 = vdwg.mxu0
    %v559 = vsel %vm343, %v555, 0.0
    %v560 = vsel %vm344, %v557, 0.0
    %561 = vrot.lane.b32.xlu0 %v348, 32
    %v562 = vpop.permute.xlu0 %561
    %v564 = vadd.f32 %v559, %v562
    %v565 = vadd.f32 %v560, %v562
    %v566 = vmax.f32 %v564, 0.0
    %v567 = vmax.f32 %v565, 0.0
    %v568 = vadd.f32 %v497, %v566
    %v569 = vadd.f32 %v498, %v567
    %v570 = vmul.f32 %v568, 0.25
    %v571 = vmul.f32 %v569, 0.25
    %v572 = vld [vmem:[%s9] sm:$0xf]
    %v573 = vld [vmem:[%s9 + $0x4] sm:$0xf]
    %v574 = vld [vmem:[%s9 + $0x8] sm:$0xf]
    %v575 = vld [vmem:[%s9 + $0xc] sm:$0xf]
    %v576 = vld [vmem:[%s10] sm:$0x1]
    %v577 = vld [vmem:[%s11] sm:$0xf]
    %v578 = vld [vmem:[%s11 + $0x4] sm:$0xf]
    %v579 = vld [vmem:[%s11 + $0x8] sm:$0xf]
    %v580 = vld [vmem:[%s11 + $0xc] sm:$0xf]
    %v581 = vld [vmem:[%s12] sm:$0xf]
    %v582 = vld [vmem:[%s13] sm:$0xff]
    %v583 = vld [vmem:[%s13 + $0x8] sm:$0xff]
    %v584 = vld [vmem:[%s13 + $0x10] sm:$0xff]
    %v585 = vld [vmem:[%s13 + $0x18] sm:$0xff]
    %v586 = vld [vmem:[%s13 + $0x20] sm:$0xff]
    %v587 = vld [vmem:[%s13 + $0x28] sm:$0xff]
    %v588 = vld [vmem:[%s13 + $0x30] sm:$0xff]
    %v589 = vld [vmem:[%s13 + $0x38] sm:$0xff]
    %v590 = vld [vmem:[%s13 + $0x40] sm:$0xff]
    %v591 = vld [vmem:[%s13 + $0x48] sm:$0xff]
    %v592 = vld [vmem:[%s13 + $0x50] sm:$0xff]
    %v593 = vld [vmem:[%s13 + $0x58] sm:$0xff]
    %v594 = vld [vmem:[%s13 + $0x60] sm:$0xff]
    %v595 = vld [vmem:[%s13 + $0x68] sm:$0xff]
    %v596 = vld [vmem:[%s13 + $0x70] sm:$0xff]
    %v597 = vld [vmem:[%s13 + $0x78] sm:$0xff]
    %v598 = vld [vmem:[%s14] sm:$0x1]
    %v599 = vpack.c.bf16 %v571, %v570
    %v604 = vunpack.c.l.b16 %v572
    %v605 = vunpack.c.l.b16 %v573
    %v606 = vunpack.c.l.b16 %v574
    %v607 = vunpack.c.l.b16 %v575
    %v608 = vpack.c.b16 %v605, %v604
    %v609 = vpack.c.b16 %v607, %v606
    %v613 = vsel %vm131, %v599, 0
    %615 = vmatpush.bf16.msra.mxu0 0
    %616 = vmatpush.bf16.msra.mxu0 0
    %617 = vmatpush.bf16.msra.mxu0 0
    %618 = vmatpush.bf16.msra.mxu0 0
    %619 = vmatpush.bf16.msra.mxu0 0
    %620 = vmatpush.bf16.msra.mxu0 0
    %621 = vmatpush.bf16.msra.mxu0 %v609
    %622 = vmatpush.bf16.msra.mxu0 %v608
    %623 = vmatmul.bf16.gmra.mxu0 %v613
    %v624 = vpop.f32.mrf.mxu0
    %v625 = vadd.f32 0.0, %v624
    %v626 = vpop.f32.mrf.mxu0
    %v627 = vadd.f32 0.0, %v626
    %628 = vdwg.mxu0
    %v629 = vpack.c.bf16 %v627, %v625
    %630 = vmatpush.bf16.msra.mxu0 0
    %631 = vmatpush.bf16.msra.mxu0 0
    %632 = vmatpush.bf16.msra.mxu0 0
    %633 = vmatpush.bf16.msra.mxu0 0
    %634 = vmatpush.bf16.msra.mxu0 0
    %635 = vmatpush.bf16.msra.mxu0 0
    %636 = vmatpush.bf16.msra.mxu0 0
    %637 = vmatpush.bf16.msra.mxu0 %v629
    %638 = vmatmul.bf16.gmra.mxu0 %v157
    %v639 = vpop.f32.mrf.mxu0
    %v640 = vadd.f32 0.0, %v639
    %v641 = vpop.f32.mrf.mxu0
    %v642 = vadd.f32 0.0, %v641
    %643 = vdwg.mxu0
    %v644 = vmul.f32 %v640, %v176
    %v645 = vmul.f32 %v642, %v181
    %648 = vrot.lane.b32.xlu0 %v625, 96
    %v649 = vpop.permute.xlu0 %648
    %650 = vrot.lane.b32.xlu0 %v627, 96
    %v651 = vpop.permute.xlu0 %650
    %v654 = vadd.f32 %v644, %v649
    %v655 = vadd.f32 %v645, %v651
    %v657 = vperm.slane %v576, 0
    %v659 = vadd.f32 %v654, %v657
    %v660 = vadd.f32 %v655, %v657
    %v661 = vmax.f32 %v659, 0.0
    %v662 = vmax.f32 %v660, 0.0
    %v663 = vpack.c.bf16 %v662, %v661
    %v668 = vunpack.c.l.b16 %v577
    %v669 = vunpack.c.l.b16 %v578
    %v670 = vunpack.c.l.b16 %v579
    %v671 = vunpack.c.l.b16 %v580
    %v672 = vpack.c.b16 %v669, %v668
    %v673 = vpack.c.b16 %v671, %v670
    %v677 = vsel %vm131, %v663, 0
    %679 = vmatpush.bf16.msra.mxu0 0
    %680 = vmatpush.bf16.msra.mxu0 0
    %681 = vmatpush.bf16.msra.mxu0 0
    %682 = vmatpush.bf16.msra.mxu0 0
    %683 = vmatpush.bf16.msra.mxu0 0
    %684 = vmatpush.bf16.msra.mxu0 0
    %685 = vmatpush.bf16.msra.mxu0 %v673
    %686 = vmatpush.bf16.msra.mxu0 %v672
    %687 = vmatmul.bf16.gmra.mxu0 %v677
    %v688 = vpop.f32.mrf.mxu0
    %v689 = vadd.f32 0.0, %v688
    %v690 = vpop.f32.mrf.mxu0
    %v691 = vadd.f32 0.0, %v690
    %692 = vdwg.mxu0
    %693 = vmatpush.msra.mxu0 %v597
    %694 = vmatpush.msra.mxu0 %v596
    %695 = vmatpush.msra.mxu0 %v595
    %696 = vmatpush.msra.mxu0 %v594
    %697 = vmatpush.msra.mxu0 %v593
    %698 = vmatpush.msra.mxu0 %v592
    %699 = vmatpush.msra.mxu0 %v591
    %700 = vmatpush.msra.mxu0 %v590
    %701 = vmatpush.msra.mxu0 %v589
    %702 = vmatpush.msra.mxu0 %v588
    %703 = vmatpush.msra.mxu0 %v587
    %704 = vmatpush.msra.mxu0 %v586
    %705 = vmatpush.msra.mxu0 %v585
    %706 = vmatpush.msra.mxu0 %v584
    %707 = vmatpush.msra.mxu0 %v583
    %708 = vmatpush.msra.mxu0 %v582
    %709 = vmatmul.f32.gmra.mxu0 %v689
    %v710 = vpop.f32.mrf.mxu0
    %v711 = vadd.f32 0.0, %v710
    %712 = vmatmul.f32.gmra.mxu0 %v691
    %v713 = vpop.f32.mrf.mxu0
    %v714 = vadd.f32 0.0, %v713
    %715 = vdwg.mxu0
    %716 = vmatpush.xpose.msra.mxu0 0.0
    %717 = vmatpush.xpose.msra.mxu0 0.0
    %718 = vmatpush.xpose.msra.mxu0 0.0
    %719 = vmatpush.xpose.msra.mxu0 0.0
    %720 = vmatpush.xpose.msra.mxu0 0.0
    %721 = vmatpush.xpose.msra.mxu0 0.0
    %722 = vmatpush.xpose.msra.mxu0 0.0
    %723 = vmatpush.xpose.msra.mxu0 0.0
    %724 = vmatpush.xpose.msra.mxu0 0.0
    %725 = vmatpush.xpose.msra.mxu0 0.0
    %726 = vmatpush.xpose.msra.mxu0 0.0
    %727 = vmatpush.xpose.msra.mxu0 0.0
    %728 = vmatpush.xpose.msra.mxu0 0.0
    %729 = vmatpush.xpose.msra.mxu0 0.0
    %730 = vmatpush.xpose.msra.mxu0 %v691
    %731 = vmatpush.xpose.msra.mxu0 %v689
    %732 = vmatmul.f32.gmra.mxu0 %v581
    %v733 = vpop.f32.mrf.mxu0
    %v734 = vadd.f32 0.0, %v733
    %735 = vdwg.mxu0
    %737 = vset.pattern.permute.xlu0 0
    %738 = vperm.xlu0 %737, %v711
    %v739 = vpop.permute.xlu0 %738
    %742 = vset.pattern.permute.xlu0 0
    %743 = vperm.xlu0 %742, %v714
    %v744 = vpop.permute.xlu0 %743
    %v746 = vperm.slane %v734, 0
    %v747 = vadd.f32 %v739, %v746
    %v748 = vadd.f32 %v744, %v746
    %v749 = vmul.f32 %v747, 0.2
    %v750 = vmul.f32 %v748, 0.2
    %v751 = vmax.f32 %v747, %v749
    %v752 = vmax.f32 %v748, %v750
    %v753 = vadd.f32 %v751, %v89
    %v754 = vadd.f32 %v752, %v90
    %v755 = vsel %vm155, %v753, -inf
    %756 = vmax.xlane.f32.xlu0 %v755
    %v757 = vpop.xlane.xlu0 %756
    %v758 = vsel %vm155, %v754, -inf
    %759 = vmax.xlane.f32.xlu0 %v758
    %v760 = vpop.xlane.xlu0 %759
    %v761 = vsub.f32 %v753, %v757
    %v762 = vsub.f32 %v754, %v760
    %v763 = vmul.f32 %v761, 1.442695
    %v764 = vpow.pop %v763
    %v765 = vmul.f32 %v762, 1.442695
    %v766 = vpow.pop %v765
    %v767 = vsel %vm155, %v764, 0.0
    %768 = vadd.xlane.f32.xlu0 %v767
    %v769 = vpop.xlane.xlu0 %768
    %v770 = vsel %vm155, %v766, 0.0
    %771 = vadd.xlane.f32.xlu0 %v770
    %v772 = vpop.xlane.xlu0 %771
    %v773 = vrcp.pop %v769
    %v774 = vrcp.pop %v772
    %v775 = vmul.f32 %v764, %v773
    %v776 = vmul.f32 %v766, %v774
    %v777 = vpack.c.bf16 %v776, %v775
    %v778 = vpack.c.bf16 %v691, %v689
    %v780 = vsel %vm155, %v777, 0
    %782 = vmatpush.bf16.msra.mxu0 0
    %783 = vmatpush.bf16.msra.mxu0 0
    %784 = vmatpush.bf16.msra.mxu0 0
    %785 = vmatpush.bf16.msra.mxu0 0
    %786 = vmatpush.bf16.msra.mxu0 0
    %787 = vmatpush.bf16.msra.mxu0 0
    %788 = vmatpush.bf16.msra.mxu0 0
    %789 = vmatpush.bf16.msra.mxu0 %v778
    %790 = vmatmul.bf16.gmra.mxu0 %v780
    %v791 = vpop.f32.mrf.mxu0
    %v792 = vadd.f32 0.0, %v791
    %v793 = vpop.f32.mrf.mxu0
    %v794 = vadd.f32 0.0, %v793
    %795 = vdwg.mxu0
    %v796 = vsel %vm343, %v792, 0.0
    %v797 = vsel %vm344, %v794, 0.0
    %v799 = vperm.slane %v598, 0
    %v801 = vadd.f32 %v796, %v799
    %v802 = vadd.f32 %v797, %v799
    %v803 = vmax.f32 %v801, 0.0
    %v804 = vmax.f32 %v802, 0.0
    %v805 = vadd.f32 %v803, 0.0
    %v806 = vadd.f32 %v804, 0.0
    %807 = vset.pattern.permute.xlu0 1
    %808 = vperm.xlu0 %807, %v711
    %v809 = vpop.permute.xlu0 %808
    %811 = vset.pattern.permute.xlu0 1
    %812 = vperm.xlu0 %811, %v714
    %v813 = vpop.permute.xlu0 %812
    %v815 = vperm.slane %v734, 1
    %v816 = vadd.f32 %v809, %v815
    %v817 = vadd.f32 %v813, %v815
    %v818 = vmul.f32 %v816, 0.2
    %v819 = vmul.f32 %v817, 0.2
    %v820 = vmax.f32 %v816, %v818
    %v821 = vmax.f32 %v817, %v819
    %v822 = vadd.f32 %v820, %v89
    %v823 = vadd.f32 %v821, %v90
    %v824 = vsel %vm155, %v822, -inf
    %825 = vmax.xlane.f32.xlu0 %v824
    %v826 = vpop.xlane.xlu0 %825
    %v827 = vsel %vm155, %v823, -inf
    %828 = vmax.xlane.f32.xlu0 %v827
    %v829 = vpop.xlane.xlu0 %828
    %v830 = vsub.f32 %v822, %v826
    %v831 = vsub.f32 %v823, %v829
    %v832 = vmul.f32 %v830, 1.442695
    %v833 = vpow.pop %v832
    %v834 = vmul.f32 %v831, 1.442695
    %v835 = vpow.pop %v834
    %v836 = vsel %vm155, %v833, 0.0
    %837 = vadd.xlane.f32.xlu0 %v836
    %v838 = vpop.xlane.xlu0 %837
    %v839 = vsel %vm155, %v835, 0.0
    %840 = vadd.xlane.f32.xlu0 %v839
    %v841 = vpop.xlane.xlu0 %840
    %v842 = vrcp.pop %v838
    %v843 = vrcp.pop %v841
    %v844 = vmul.f32 %v833, %v842
    %v845 = vmul.f32 %v835, %v843
    %v846 = vpack.c.bf16 %v845, %v844
    %848 = vrot.lane.b32.xlu0 %v778, 96
    %v849 = vpop.permute.xlu0 %848
    %v852 = vsel %vm155, %v846, 0
    %854 = vmatpush.bf16.msra.mxu0 0
    %855 = vmatpush.bf16.msra.mxu0 0
    %856 = vmatpush.bf16.msra.mxu0 0
    %857 = vmatpush.bf16.msra.mxu0 0
    %858 = vmatpush.bf16.msra.mxu0 0
    %859 = vmatpush.bf16.msra.mxu0 0
    %860 = vmatpush.bf16.msra.mxu0 0
    %861 = vmatpush.bf16.msra.mxu0 %v849
    %862 = vmatmul.bf16.gmra.mxu0 %v852
    %v863 = vpop.f32.mrf.mxu0
    %v864 = vadd.f32 0.0, %v863
    %v865 = vpop.f32.mrf.mxu0
    %v866 = vadd.f32 0.0, %v865
    %867 = vdwg.mxu0
    %v868 = vsel %vm343, %v864, 0.0
    %v869 = vsel %vm344, %v866, 0.0
    %870 = vrot.lane.b32.xlu0 %v799, 96
    %v871 = vpop.permute.xlu0 %870
    %v873 = vadd.f32 %v868, %v871
    %v874 = vadd.f32 %v869, %v871
    %v875 = vmax.f32 %v873, 0.0
    %v876 = vmax.f32 %v874, 0.0
    %v877 = vadd.f32 %v805, %v875
    %v878 = vadd.f32 %v806, %v876
    %879 = vset.pattern.permute.xlu0 2
    %880 = vperm.xlu0 %879, %v711
    %v881 = vpop.permute.xlu0 %880
    %883 = vset.pattern.permute.xlu0 2
    %884 = vperm.xlu0 %883, %v714
    %v885 = vpop.permute.xlu0 %884
    %v887 = vperm.slane %v734, 2
    %v888 = vadd.f32 %v881, %v887
    %v889 = vadd.f32 %v885, %v887
    %v890 = vmul.f32 %v888, 0.2
    %v891 = vmul.f32 %v889, 0.2
    %v892 = vmax.f32 %v888, %v890
    %v893 = vmax.f32 %v889, %v891
    %v894 = vadd.f32 %v892, %v89
    %v895 = vadd.f32 %v893, %v90
    %v896 = vsel %vm155, %v894, -inf
    %897 = vmax.xlane.f32.xlu0 %v896
    %v898 = vpop.xlane.xlu0 %897
    %v899 = vsel %vm155, %v895, -inf
    %900 = vmax.xlane.f32.xlu0 %v899
    %v901 = vpop.xlane.xlu0 %900
    %v902 = vsub.f32 %v894, %v898
    %v903 = vsub.f32 %v895, %v901
    %v904 = vmul.f32 %v902, 1.442695
    %v905 = vpow.pop %v904
    %v906 = vmul.f32 %v903, 1.442695
    %v907 = vpow.pop %v906
    %v908 = vsel %vm155, %v905, 0.0
    %909 = vadd.xlane.f32.xlu0 %v908
    %v910 = vpop.xlane.xlu0 %909
    %v911 = vsel %vm155, %v907, 0.0
    %912 = vadd.xlane.f32.xlu0 %v911
    %v913 = vpop.xlane.xlu0 %912
    %v914 = vrcp.pop %v910
    %v915 = vrcp.pop %v913
    %v916 = vmul.f32 %v905, %v914
    %v917 = vmul.f32 %v907, %v915
    %v918 = vpack.c.bf16 %v917, %v916
    %919 = vrot.lane.b32.xlu0 %v778, 64
    %v920 = vpop.permute.xlu0 %919
    %v923 = vsel %vm155, %v918, 0
    %925 = vmatpush.bf16.msra.mxu0 0
    %926 = vmatpush.bf16.msra.mxu0 0
    %927 = vmatpush.bf16.msra.mxu0 0
    %928 = vmatpush.bf16.msra.mxu0 0
    %929 = vmatpush.bf16.msra.mxu0 0
    %930 = vmatpush.bf16.msra.mxu0 0
    %931 = vmatpush.bf16.msra.mxu0 0
    %932 = vmatpush.bf16.msra.mxu0 %v920
    %933 = vmatmul.bf16.gmra.mxu0 %v923
    %v934 = vpop.f32.mrf.mxu0
    %v935 = vadd.f32 0.0, %v934
    %v936 = vpop.f32.mrf.mxu0
    %v937 = vadd.f32 0.0, %v936
    %938 = vdwg.mxu0
    %v939 = vsel %vm343, %v935, 0.0
    %v940 = vsel %vm344, %v937, 0.0
    %941 = vrot.lane.b32.xlu0 %v799, 64
    %v942 = vpop.permute.xlu0 %941
    %v944 = vadd.f32 %v939, %v942
    %v945 = vadd.f32 %v940, %v942
    %v946 = vmax.f32 %v944, 0.0
    %v947 = vmax.f32 %v945, 0.0
    %v948 = vadd.f32 %v877, %v946
    %v949 = vadd.f32 %v878, %v947
    %950 = vset.pattern.permute.xlu0 3
    %951 = vperm.xlu0 %950, %v711
    %v952 = vpop.permute.xlu0 %951
    %954 = vset.pattern.permute.xlu0 3
    %955 = vperm.xlu0 %954, %v714
    %v956 = vpop.permute.xlu0 %955
    %v958 = vperm.slane %v734, 3
    %v959 = vadd.f32 %v952, %v958
    %v960 = vadd.f32 %v956, %v958
    %v961 = vmul.f32 %v959, 0.2
    %v962 = vmul.f32 %v960, 0.2
    %v963 = vmax.f32 %v959, %v961
    %v964 = vmax.f32 %v960, %v962
    %v965 = vadd.f32 %v963, %v89
    %v966 = vadd.f32 %v964, %v90
    %v967 = vsel %vm155, %v965, -inf
    %968 = vmax.xlane.f32.xlu0 %v967
    %v969 = vpop.xlane.xlu0 %968
    %v970 = vsel %vm155, %v966, -inf
    %971 = vmax.xlane.f32.xlu0 %v970
    %v972 = vpop.xlane.xlu0 %971
    %v973 = vsub.f32 %v965, %v969
    %v974 = vsub.f32 %v966, %v972
    %v975 = vmul.f32 %v973, 1.442695
    %v976 = vpow.pop %v975
    %v977 = vmul.f32 %v974, 1.442695
    %v978 = vpow.pop %v977
    %v979 = vsel %vm155, %v976, 0.0
    %980 = vadd.xlane.f32.xlu0 %v979
    %v981 = vpop.xlane.xlu0 %980
    %v982 = vsel %vm155, %v978, 0.0
    %983 = vadd.xlane.f32.xlu0 %v982
    %v984 = vpop.xlane.xlu0 %983
    %v985 = vrcp.pop %v981
    %v986 = vrcp.pop %v984
    %v987 = vmul.f32 %v976, %v985
    %v988 = vmul.f32 %v978, %v986
    %v989 = vpack.c.bf16 %v988, %v987
    %990 = vrot.lane.b32.xlu0 %v778, 32
    %v991 = vpop.permute.xlu0 %990
    %v994 = vsel %vm155, %v989, 0
    %996 = vmatpush.bf16.msra.mxu0 0
    %997 = vmatpush.bf16.msra.mxu0 0
    %998 = vmatpush.bf16.msra.mxu0 0
    %999 = vmatpush.bf16.msra.mxu0 0
    %1000 = vmatpush.bf16.msra.mxu0 0
    %1001 = vmatpush.bf16.msra.mxu0 0
    %1002 = vmatpush.bf16.msra.mxu0 0
    %1003 = vmatpush.bf16.msra.mxu0 %v991
    %1004 = vmatmul.bf16.gmra.mxu0 %v994
    %v1005 = vpop.f32.mrf.mxu0
    %v1006 = vadd.f32 0.0, %v1005
    %v1007 = vpop.f32.mrf.mxu0
    %v1008 = vadd.f32 0.0, %v1007
    %1009 = vdwg.mxu0
    %v1010 = vsel %vm343, %v1006, 0.0
    %v1011 = vsel %vm344, %v1008, 0.0
    %1012 = vrot.lane.b32.xlu0 %v799, 32
    %v1013 = vpop.permute.xlu0 %1012
    %v1015 = vadd.f32 %v1010, %v1013
    %v1016 = vadd.f32 %v1011, %v1013
    %v1017 = vmax.f32 %v1015, 0.0
    %v1018 = vmax.f32 %v1016, 0.0
    %v1019 = vadd.f32 %v948, %v1017
    %v1020 = vadd.f32 %v949, %v1018
    %v1021 = vmul.f32 %v1019, 0.25
    %v1022 = vmul.f32 %v1020, 0.25
    %v1023 = vld [vmem:[%s15] sm:$0xf]
    %v1024 = vld [vmem:[%s15 + $0x4] sm:$0xf]
    %v1025 = vld [vmem:[%s15 + $0x8] sm:$0xf]
    %v1026 = vld [vmem:[%s15 + $0xc] sm:$0xf]
    %v1027 = vld [vmem:[%s16] sm:$0x1]
    %v1028 = vld [vmem:[%s17] sm:$0xf]
    %v1029 = vld [vmem:[%s17 + $0x4] sm:$0xf]
    %v1030 = vld [vmem:[%s17 + $0x8] sm:$0xf]
    %v1031 = vld [vmem:[%s17 + $0xc] sm:$0xf]
    %v1032 = vld [vmem:[%s18] sm:$0xf]
    %v1033 = vld [vmem:[%s19] sm:$0xff]
    %v1034 = vld [vmem:[%s19 + $0x8] sm:$0xff]
    %v1035 = vld [vmem:[%s19 + $0x10] sm:$0xff]
    %v1036 = vld [vmem:[%s19 + $0x18] sm:$0xff]
    %v1037 = vld [vmem:[%s19 + $0x20] sm:$0xff]
    %v1038 = vld [vmem:[%s19 + $0x28] sm:$0xff]
    %v1039 = vld [vmem:[%s19 + $0x30] sm:$0xff]
    %v1040 = vld [vmem:[%s19 + $0x38] sm:$0xff]
    %v1041 = vld [vmem:[%s19 + $0x40] sm:$0xff]
    %v1042 = vld [vmem:[%s19 + $0x48] sm:$0xff]
    %v1043 = vld [vmem:[%s19 + $0x50] sm:$0xff]
    %v1044 = vld [vmem:[%s19 + $0x58] sm:$0xff]
    %v1045 = vld [vmem:[%s19 + $0x60] sm:$0xff]
    %v1046 = vld [vmem:[%s19 + $0x68] sm:$0xff]
    %v1047 = vld [vmem:[%s19 + $0x70] sm:$0xff]
    %v1048 = vld [vmem:[%s19 + $0x78] sm:$0xff]
    %v1049 = vld [vmem:[%s20] sm:$0x1]
    %v1050 = vpack.c.bf16 %v1022, %v1021
    %v1055 = vunpack.c.l.b16 %v1023
    %v1056 = vunpack.c.l.b16 %v1024
    %v1057 = vunpack.c.l.b16 %v1025
    %v1058 = vunpack.c.l.b16 %v1026
    %v1059 = vpack.c.b16 %v1056, %v1055
    %v1060 = vpack.c.b16 %v1058, %v1057
    %v1064 = vsel %vm131, %v1050, 0
    %1066 = vmatpush.bf16.msra.mxu0 0
    %1067 = vmatpush.bf16.msra.mxu0 0
    %1068 = vmatpush.bf16.msra.mxu0 0
    %1069 = vmatpush.bf16.msra.mxu0 0
    %1070 = vmatpush.bf16.msra.mxu0 0
    %1071 = vmatpush.bf16.msra.mxu0 0
    %1072 = vmatpush.bf16.msra.mxu0 %v1060
    %1073 = vmatpush.bf16.msra.mxu0 %v1059
    %1074 = vmatmul.bf16.gmra.mxu0 %v1064
    %v1075 = vpop.f32.mrf.mxu0
    %v1076 = vadd.f32 0.0, %v1075
    %v1077 = vpop.f32.mrf.mxu0
    %v1078 = vadd.f32 0.0, %v1077
    %1079 = vdwg.mxu0
    %v1080 = vpack.c.bf16 %v1078, %v1076
    %1081 = vmatpush.bf16.msra.mxu0 0
    %1082 = vmatpush.bf16.msra.mxu0 0
    %1083 = vmatpush.bf16.msra.mxu0 0
    %1084 = vmatpush.bf16.msra.mxu0 0
    %1085 = vmatpush.bf16.msra.mxu0 0
    %1086 = vmatpush.bf16.msra.mxu0 0
    %1087 = vmatpush.bf16.msra.mxu0 0
    %1088 = vmatpush.bf16.msra.mxu0 %v1080
    %1089 = vmatmul.bf16.gmra.mxu0 %v157
    %v1090 = vpop.f32.mrf.mxu0
    %v1091 = vadd.f32 0.0, %v1090
    %v1092 = vpop.f32.mrf.mxu0
    %v1093 = vadd.f32 0.0, %v1092
    %1094 = vdwg.mxu0
    %v1095 = vmul.f32 %v1091, %v176
    %v1096 = vmul.f32 %v1093, %v181
    %1099 = vrot.lane.b32.xlu0 %v1076, 96
    %v1100 = vpop.permute.xlu0 %1099
    %1101 = vrot.lane.b32.xlu0 %v1078, 96
    %v1102 = vpop.permute.xlu0 %1101
    %v1105 = vadd.f32 %v1095, %v1100
    %v1106 = vadd.f32 %v1096, %v1102
    %v1108 = vperm.slane %v1027, 0
    %v1110 = vadd.f32 %v1105, %v1108
    %v1111 = vadd.f32 %v1106, %v1108
    %v1112 = vmax.f32 %v1110, 0.0
    %v1113 = vmax.f32 %v1111, 0.0
    %v1114 = vpack.c.bf16 %v1113, %v1112
    %v1119 = vunpack.c.l.b16 %v1028
    %v1120 = vunpack.c.l.b16 %v1029
    %v1121 = vunpack.c.l.b16 %v1030
    %v1122 = vunpack.c.l.b16 %v1031
    %v1123 = vpack.c.b16 %v1120, %v1119
    %v1124 = vpack.c.b16 %v1122, %v1121
    %v1128 = vsel %vm131, %v1114, 0
    %1130 = vmatpush.bf16.msra.mxu0 0
    %1131 = vmatpush.bf16.msra.mxu0 0
    %1132 = vmatpush.bf16.msra.mxu0 0
    %1133 = vmatpush.bf16.msra.mxu0 0
    %1134 = vmatpush.bf16.msra.mxu0 0
    %1135 = vmatpush.bf16.msra.mxu0 0
    %1136 = vmatpush.bf16.msra.mxu0 %v1124
    %1137 = vmatpush.bf16.msra.mxu0 %v1123
    %1138 = vmatmul.bf16.gmra.mxu0 %v1128
    %v1139 = vpop.f32.mrf.mxu0
    %v1140 = vadd.f32 0.0, %v1139
    %v1141 = vpop.f32.mrf.mxu0
    %v1142 = vadd.f32 0.0, %v1141
    %1143 = vdwg.mxu0
    %1144 = vmatpush.msra.mxu0 %v1048
    %1145 = vmatpush.msra.mxu0 %v1047
    %1146 = vmatpush.msra.mxu0 %v1046
    %1147 = vmatpush.msra.mxu0 %v1045
    %1148 = vmatpush.msra.mxu0 %v1044
    %1149 = vmatpush.msra.mxu0 %v1043
    %1150 = vmatpush.msra.mxu0 %v1042
    %1151 = vmatpush.msra.mxu0 %v1041
    %1152 = vmatpush.msra.mxu0 %v1040
    %1153 = vmatpush.msra.mxu0 %v1039
    %1154 = vmatpush.msra.mxu0 %v1038
    %1155 = vmatpush.msra.mxu0 %v1037
    %1156 = vmatpush.msra.mxu0 %v1036
    %1157 = vmatpush.msra.mxu0 %v1035
    %1158 = vmatpush.msra.mxu0 %v1034
    %1159 = vmatpush.msra.mxu0 %v1033
    %1160 = vmatmul.f32.gmra.mxu0 %v1140
    %v1161 = vpop.f32.mrf.mxu0
    %v1162 = vadd.f32 0.0, %v1161
    %1163 = vmatmul.f32.gmra.mxu0 %v1142
    %v1164 = vpop.f32.mrf.mxu0
    %v1165 = vadd.f32 0.0, %v1164
    %1166 = vdwg.mxu0
    %1167 = vmatpush.xpose.msra.mxu0 0.0
    %1168 = vmatpush.xpose.msra.mxu0 0.0
    %1169 = vmatpush.xpose.msra.mxu0 0.0
    %1170 = vmatpush.xpose.msra.mxu0 0.0
    %1171 = vmatpush.xpose.msra.mxu0 0.0
    %1172 = vmatpush.xpose.msra.mxu0 0.0
    %1173 = vmatpush.xpose.msra.mxu0 0.0
    %1174 = vmatpush.xpose.msra.mxu0 0.0
    %1175 = vmatpush.xpose.msra.mxu0 0.0
    %1176 = vmatpush.xpose.msra.mxu0 0.0
    %1177 = vmatpush.xpose.msra.mxu0 0.0
    %1178 = vmatpush.xpose.msra.mxu0 0.0
    %1179 = vmatpush.xpose.msra.mxu0 0.0
    %1180 = vmatpush.xpose.msra.mxu0 0.0
    %1181 = vmatpush.xpose.msra.mxu0 %v1142
    %1182 = vmatpush.xpose.msra.mxu0 %v1140
    %1183 = vmatmul.f32.gmra.mxu0 %v1032
    %v1184 = vpop.f32.mrf.mxu0
    %v1185 = vadd.f32 0.0, %v1184
    %1186 = vdwg.mxu0
    %1188 = vset.pattern.permute.xlu0 0
    %1189 = vperm.xlu0 %1188, %v1162
    %v1190 = vpop.permute.xlu0 %1189
    %1193 = vset.pattern.permute.xlu0 0
    %1194 = vperm.xlu0 %1193, %v1165
    %v1195 = vpop.permute.xlu0 %1194
    %v1197 = vperm.slane %v1185, 0
    %v1198 = vadd.f32 %v1190, %v1197
    %v1199 = vadd.f32 %v1195, %v1197
    %v1200 = vmul.f32 %v1198, 0.2
    %v1201 = vmul.f32 %v1199, 0.2
    %v1202 = vmax.f32 %v1198, %v1200
    %v1203 = vmax.f32 %v1199, %v1201
    %v1204 = vadd.f32 %v1202, %v89
    %v1205 = vadd.f32 %v1203, %v90
    %v1206 = vsel %vm155, %v1204, -inf
    %1207 = vmax.xlane.f32.xlu0 %v1206
    %v1208 = vpop.xlane.xlu0 %1207
    %v1209 = vsel %vm155, %v1205, -inf
    %1210 = vmax.xlane.f32.xlu0 %v1209
    %v1211 = vpop.xlane.xlu0 %1210
    %v1212 = vsub.f32 %v1204, %v1208
    %v1213 = vsub.f32 %v1205, %v1211
    %v1214 = vmul.f32 %v1212, 1.442695
    %v1215 = vpow.pop %v1214
    %v1216 = vmul.f32 %v1213, 1.442695
    %v1217 = vpow.pop %v1216
    %v1218 = vsel %vm155, %v1215, 0.0
    %1219 = vadd.xlane.f32.xlu0 %v1218
    %v1220 = vpop.xlane.xlu0 %1219
    %v1221 = vsel %vm155, %v1217, 0.0
    %1222 = vadd.xlane.f32.xlu0 %v1221
    %v1223 = vpop.xlane.xlu0 %1222
    %v1224 = vrcp.pop %v1220
    %v1225 = vrcp.pop %v1223
    %v1226 = vmul.f32 %v1215, %v1224
    %v1227 = vmul.f32 %v1217, %v1225
    %v1228 = vpack.c.bf16 %v1227, %v1226
    %v1229 = vpack.c.bf16 %v1142, %v1140
    %v1231 = vsel %vm155, %v1228, 0
    %1233 = vmatpush.bf16.msra.mxu0 0
    %1234 = vmatpush.bf16.msra.mxu0 0
    %1235 = vmatpush.bf16.msra.mxu0 0
    %1236 = vmatpush.bf16.msra.mxu0 0
    %1237 = vmatpush.bf16.msra.mxu0 0
    %1238 = vmatpush.bf16.msra.mxu0 0
    %1239 = vmatpush.bf16.msra.mxu0 0
    %1240 = vmatpush.bf16.msra.mxu0 %v1229
    %1241 = vmatmul.bf16.gmra.mxu0 %v1231
    %v1242 = vpop.f32.mrf.mxu0
    %v1243 = vadd.f32 0.0, %v1242
    %v1244 = vpop.f32.mrf.mxu0
    %v1245 = vadd.f32 0.0, %v1244
    %1246 = vdwg.mxu0
    %v1247 = vsel %vm343, %v1243, 0.0
    %v1248 = vsel %vm344, %v1245, 0.0
    %v1250 = vperm.slane %v1049, 0
    %v1252 = vadd.f32 %v1247, %v1250
    %v1253 = vadd.f32 %v1248, %v1250
    %v1254 = vmax.f32 %v1252, 0.0
    %v1255 = vmax.f32 %v1253, 0.0
    %v1256 = vadd.f32 %v1254, 0.0
    %v1257 = vadd.f32 %v1255, 0.0
    %1258 = vset.pattern.permute.xlu0 1
    %1259 = vperm.xlu0 %1258, %v1162
    %v1260 = vpop.permute.xlu0 %1259
    %1262 = vset.pattern.permute.xlu0 1
    %1263 = vperm.xlu0 %1262, %v1165
    %v1264 = vpop.permute.xlu0 %1263
    %v1266 = vperm.slane %v1185, 1
    %v1267 = vadd.f32 %v1260, %v1266
    %v1268 = vadd.f32 %v1264, %v1266
    %v1269 = vmul.f32 %v1267, 0.2
    %v1270 = vmul.f32 %v1268, 0.2
    %v1271 = vmax.f32 %v1267, %v1269
    %v1272 = vmax.f32 %v1268, %v1270
    %v1273 = vadd.f32 %v1271, %v89
    %v1274 = vadd.f32 %v1272, %v90
    %v1275 = vsel %vm155, %v1273, -inf
    %1276 = vmax.xlane.f32.xlu0 %v1275
    %v1277 = vpop.xlane.xlu0 %1276
    %v1278 = vsel %vm155, %v1274, -inf
    %1279 = vmax.xlane.f32.xlu0 %v1278
    %v1280 = vpop.xlane.xlu0 %1279
    %v1281 = vsub.f32 %v1273, %v1277
    %v1282 = vsub.f32 %v1274, %v1280
    %v1283 = vmul.f32 %v1281, 1.442695
    %v1284 = vpow.pop %v1283
    %v1285 = vmul.f32 %v1282, 1.442695
    %v1286 = vpow.pop %v1285
    %v1287 = vsel %vm155, %v1284, 0.0
    %1288 = vadd.xlane.f32.xlu0 %v1287
    %v1289 = vpop.xlane.xlu0 %1288
    %v1290 = vsel %vm155, %v1286, 0.0
    %1291 = vadd.xlane.f32.xlu0 %v1290
    %v1292 = vpop.xlane.xlu0 %1291
    %v1293 = vrcp.pop %v1289
    %v1294 = vrcp.pop %v1292
    %v1295 = vmul.f32 %v1284, %v1293
    %v1296 = vmul.f32 %v1286, %v1294
    %v1297 = vpack.c.bf16 %v1296, %v1295
    %1299 = vrot.lane.b32.xlu0 %v1229, 96
    %v1300 = vpop.permute.xlu0 %1299
    %v1303 = vsel %vm155, %v1297, 0
    %1305 = vmatpush.bf16.msra.mxu0 0
    %1306 = vmatpush.bf16.msra.mxu0 0
    %1307 = vmatpush.bf16.msra.mxu0 0
    %1308 = vmatpush.bf16.msra.mxu0 0
    %1309 = vmatpush.bf16.msra.mxu0 0
    %1310 = vmatpush.bf16.msra.mxu0 0
    %1311 = vmatpush.bf16.msra.mxu0 0
    %1312 = vmatpush.bf16.msra.mxu0 %v1300
    %1313 = vmatmul.bf16.gmra.mxu0 %v1303
    %v1314 = vpop.f32.mrf.mxu0
    %v1315 = vadd.f32 0.0, %v1314
    %v1316 = vpop.f32.mrf.mxu0
    %v1317 = vadd.f32 0.0, %v1316
    %1318 = vdwg.mxu0
    %v1319 = vsel %vm343, %v1315, 0.0
    %v1320 = vsel %vm344, %v1317, 0.0
    %1321 = vrot.lane.b32.xlu0 %v1250, 96
    %v1322 = vpop.permute.xlu0 %1321
    %v1324 = vadd.f32 %v1319, %v1322
    %v1325 = vadd.f32 %v1320, %v1322
    %v1326 = vmax.f32 %v1324, 0.0
    %v1327 = vmax.f32 %v1325, 0.0
    %v1328 = vadd.f32 %v1256, %v1326
    %v1329 = vadd.f32 %v1257, %v1327
    %1330 = vset.pattern.permute.xlu0 2
    %1331 = vperm.xlu0 %1330, %v1162
    %v1332 = vpop.permute.xlu0 %1331
    %1334 = vset.pattern.permute.xlu0 2
    %1335 = vperm.xlu0 %1334, %v1165
    %v1336 = vpop.permute.xlu0 %1335
    %v1338 = vperm.slane %v1185, 2
    %v1339 = vadd.f32 %v1332, %v1338
    %v1340 = vadd.f32 %v1336, %v1338
    %v1341 = vmul.f32 %v1339, 0.2
    %v1342 = vmul.f32 %v1340, 0.2
    %v1343 = vmax.f32 %v1339, %v1341
    %v1344 = vmax.f32 %v1340, %v1342
    %v1345 = vadd.f32 %v1343, %v89
    %v1346 = vadd.f32 %v1344, %v90
    %v1347 = vsel %vm155, %v1345, -inf
    %1348 = vmax.xlane.f32.xlu0 %v1347
    %v1349 = vpop.xlane.xlu0 %1348
    %v1350 = vsel %vm155, %v1346, -inf
    %1351 = vmax.xlane.f32.xlu0 %v1350
    %v1352 = vpop.xlane.xlu0 %1351
    %v1353 = vsub.f32 %v1345, %v1349
    %v1354 = vsub.f32 %v1346, %v1352
    %v1355 = vmul.f32 %v1353, 1.442695
    %v1356 = vpow.pop %v1355
    %v1357 = vmul.f32 %v1354, 1.442695
    %v1358 = vpow.pop %v1357
    %v1359 = vsel %vm155, %v1356, 0.0
    %1360 = vadd.xlane.f32.xlu0 %v1359
    %v1361 = vpop.xlane.xlu0 %1360
    %v1362 = vsel %vm155, %v1358, 0.0
    %1363 = vadd.xlane.f32.xlu0 %v1362
    %v1364 = vpop.xlane.xlu0 %1363
    %v1365 = vrcp.pop %v1361
    %v1366 = vrcp.pop %v1364
    %v1367 = vmul.f32 %v1356, %v1365
    %v1368 = vmul.f32 %v1358, %v1366
    %v1369 = vpack.c.bf16 %v1368, %v1367
    %1370 = vrot.lane.b32.xlu0 %v1229, 64
    %v1371 = vpop.permute.xlu0 %1370
    %v1374 = vsel %vm155, %v1369, 0
    %1376 = vmatpush.bf16.msra.mxu0 0
    %1377 = vmatpush.bf16.msra.mxu0 0
    %1378 = vmatpush.bf16.msra.mxu0 0
    %1379 = vmatpush.bf16.msra.mxu0 0
    %1380 = vmatpush.bf16.msra.mxu0 0
    %1381 = vmatpush.bf16.msra.mxu0 0
    %1382 = vmatpush.bf16.msra.mxu0 0
    %1383 = vmatpush.bf16.msra.mxu0 %v1371
    %1384 = vmatmul.bf16.gmra.mxu0 %v1374
    %v1385 = vpop.f32.mrf.mxu0
    %v1386 = vadd.f32 0.0, %v1385
    %v1387 = vpop.f32.mrf.mxu0
    %v1388 = vadd.f32 0.0, %v1387
    %1389 = vdwg.mxu0
    %v1390 = vsel %vm343, %v1386, 0.0
    %v1391 = vsel %vm344, %v1388, 0.0
    %1392 = vrot.lane.b32.xlu0 %v1250, 64
    %v1393 = vpop.permute.xlu0 %1392
    %v1395 = vadd.f32 %v1390, %v1393
    %v1396 = vadd.f32 %v1391, %v1393
    %v1397 = vmax.f32 %v1395, 0.0
    %v1398 = vmax.f32 %v1396, 0.0
    %v1399 = vadd.f32 %v1328, %v1397
    %v1400 = vadd.f32 %v1329, %v1398
    %1401 = vset.pattern.permute.xlu0 3
    %1402 = vperm.xlu0 %1401, %v1162
    %v1403 = vpop.permute.xlu0 %1402
    %1405 = vset.pattern.permute.xlu0 3
    %1406 = vperm.xlu0 %1405, %v1165
    %v1407 = vpop.permute.xlu0 %1406
    %v1409 = vperm.slane %v1185, 3
    %v1410 = vadd.f32 %v1403, %v1409
    %v1411 = vadd.f32 %v1407, %v1409
    %v1412 = vmul.f32 %v1410, 0.2
    %v1413 = vmul.f32 %v1411, 0.2
    %v1414 = vmax.f32 %v1410, %v1412
    %v1415 = vmax.f32 %v1411, %v1413
    %v1416 = vadd.f32 %v1414, %v89
    %v1417 = vadd.f32 %v1415, %v90
    %v1418 = vsel %vm155, %v1416, -inf
    %1419 = vmax.xlane.f32.xlu0 %v1418
    %v1420 = vpop.xlane.xlu0 %1419
    %v1421 = vsel %vm155, %v1417, -inf
    %1422 = vmax.xlane.f32.xlu0 %v1421
    %v1423 = vpop.xlane.xlu0 %1422
    %v1424 = vsub.f32 %v1416, %v1420
    %v1425 = vsub.f32 %v1417, %v1423
    %v1426 = vmul.f32 %v1424, 1.442695
    %v1427 = vpow.pop %v1426
    %v1428 = vmul.f32 %v1425, 1.442695
    %v1429 = vpow.pop %v1428
    %v1430 = vsel %vm155, %v1427, 0.0
    %1431 = vadd.xlane.f32.xlu0 %v1430
    %v1432 = vpop.xlane.xlu0 %1431
    %v1433 = vsel %vm155, %v1429, 0.0
    %1434 = vadd.xlane.f32.xlu0 %v1433
    %v1435 = vpop.xlane.xlu0 %1434
    %v1436 = vrcp.pop %v1432
    %v1437 = vrcp.pop %v1435
    %v1438 = vmul.f32 %v1427, %v1436
    %v1439 = vmul.f32 %v1429, %v1437
    %v1440 = vpack.c.bf16 %v1439, %v1438
    %1441 = vrot.lane.b32.xlu0 %v1229, 32
    %v1442 = vpop.permute.xlu0 %1441
    %v1445 = vsel %vm155, %v1440, 0
    %1447 = vmatpush.bf16.msra.mxu0 0
    %1448 = vmatpush.bf16.msra.mxu0 0
    %1449 = vmatpush.bf16.msra.mxu0 0
    %1450 = vmatpush.bf16.msra.mxu0 0
    %1451 = vmatpush.bf16.msra.mxu0 0
    %1452 = vmatpush.bf16.msra.mxu0 0
    %1453 = vmatpush.bf16.msra.mxu0 0
    %1454 = vmatpush.bf16.msra.mxu0 %v1442
    %1455 = vmatmul.bf16.gmra.mxu0 %v1445
    %v1456 = vpop.f32.mrf.mxu0
    %v1457 = vadd.f32 0.0, %v1456
    %v1458 = vpop.f32.mrf.mxu0
    %v1459 = vadd.f32 0.0, %v1458
    %1460 = vdwg.mxu0
    %v1461 = vsel %vm343, %v1457, 0.0
    %v1462 = vsel %vm344, %v1459, 0.0
    %1463 = vrot.lane.b32.xlu0 %v1250, 32
    %v1464 = vpop.permute.xlu0 %1463
    %v1466 = vadd.f32 %v1461, %v1464
    %v1467 = vadd.f32 %v1462, %v1464
    %v1468 = vmax.f32 %v1466, 0.0
    %v1469 = vmax.f32 %v1467, 0.0
    %v1470 = vadd.f32 %v1399, %v1468
    %v1471 = vadd.f32 %v1400, %v1469
    %v1472 = vmul.f32 %v1470, 0.25
    %v1473 = vmul.f32 %v1471, 0.25
    %v1474 = vld [vmem:[%s21] sm:$0x1]
    %v1476 = vperm.slane %v1474, 0
    %v1478 = vmul.f32 %v1472, %v1476
    %v1479 = vmul.f32 %v1473, %v1476
    %v1480 = vsel %vm131, %v1478, 0.0
    %1481 = vadd.xlane.f32.xlu0 %v1480
    %v1482 = vpop.xlane.xlu0 %1481
    %v1483 = vsel %vm131, %v1479, 0.0
    %1484 = vadd.xlane.f32.xlu0 %v1483
    %v1485 = vpop.xlane.xlu0 %1484
    %s1486 = sld [smem:[#allocation2]]
    %v1487 = vstv %s1486
    %v1488 = vadd.f32 %v1482, %v1487
    %v1489 = vadd.f32 %v1485, %v1487
    %v1490 = vmul.f32 %v1488, 1.442695
    %v1491 = vpow.pop %v1490
    %v1492 = vmul.f32 %v1489, 1.442695
    %v1493 = vpow.pop %v1492
    %v1494 = vmul.f32 %v1472, %v1491
    %v1495 = vmul.f32 %v1473, %v1493
    %v1496 = vmul.f32 %v1494, %v1494
    %v1497 = vmul.f32 %v1495, %v1495
    %v1498 = vsel %vm131, %v1496, 0.0
    %1499 = vadd.xlane.f32.xlu0 %v1498
    %v1500 = vpop.xlane.xlu0 %1499
    %v1501 = vsel %vm131, %v1497, 0.0
    %1502 = vadd.xlane.f32.xlu0 %v1501
    %v1503 = vpop.xlane.xlu0 %1502
    %v1504 = vmax.f32 %v1500, 1e-24
    %v1505 = vmax.f32 %v1503, 1e-24
    %v1506 = vrsqrt.pop %v1504
    %v1507 = vmul.f32 %v1506, %v1504
    %v1508 = vmul.f32 %v1507, %v1506
    %v1509 = vmul.f32 0.5, %v1508
    %v1510 = vsub.f32 1.5, %v1509
    %v1511 = vmul.f32 %v1506, %v1510
    %vm1512 = vweird.f32 %v1504
    %vm1513 = vweird.f32 %v1506
    %vm1514 = vmor %vm1512, %vm1513
    %v1515 = vsel %vm1514, %v1506, %v1511
    %v1516 = vrsqrt.pop %v1505
    %v1517 = vmul.f32 %v1516, %v1505
    %v1518 = vmul.f32 %v1517, %v1516
    %v1519 = vmul.f32 0.5, %v1518
    %v1520 = vsub.f32 1.5, %v1519
    %v1521 = vmul.f32 %v1516, %v1520
    %vm1522 = vweird.f32 %v1505
    %vm1523 = vweird.f32 %v1516
    %vm1524 = vmor %vm1522, %vm1523
    %v1525 = vsel %vm1524, %v1516, %v1521
    %v1526 = vmul.f32 %v1494, %v1515
    %v1527 = vmul.f32 %v1495, %v1525
    %1528 = vst.msk [vmem:[#allocation3] sm:$0xff] %vm131, %v1526
    %1529 = vst.msk [vmem:[#allocation3 + $0x8] sm:$0xff] %vm131, %v1527
    // Predicated region
    $region94: #{gnn_forward.1} parent=1 // pred_check
      _
    $region95: #{gnn_forward.1} parent=1 // pred_check_branch
      %1531 = sbr.rel (0) target = $region97
    $region96: #{gnn_forward.1} parent=1 // pred_region
      %1533 = vsyncadd [#allocation4], 0
      %s1534 = sshll.u32 [#allocation3], 4
      %s1535 = int_to_ptr.vmem [resolvable:$true] %s1534
      %s1536 = sshll.u32 %s23, 4
      %s1537 = int_to_ptr.hbm [resolvable:$true] %s1536
      %1542 = dma.vmem_to_hbm [thread:$0]  %s1535, 256, %s1537, [#allocation4], 128, 128, 8
    $region97: #{gnn_forward.1} parent=1 // pred_fallthru
      _
    // Predicated region
    $region98: #{gnn_forward.1} parent=1 // pred_check
      _
    $region99: #{gnn_forward.1} parent=1 // pred_check_branch
      %1544 = sbr.rel (0) target = $region101
    $region100: #{gnn_forward.1} parent=1 // pred_region
      %1546 = dma.done [#allocation4], 256
    $region101: #{gnn_forward.1} parent=1 // pred_fallthru
      _
    %1547 = vsyncpa [#allocation4], 1

</llo_original>
